<compile_context>
chip_gen: v6e
topology: v6e:2x2x1
jax: 0.10.0
libtpu: 0.0.40
codegen_flags: <defaults>
</compile_context>

<pallas_src>
import functools
import math

import jax
import jax.numpy as jnp
from jax import lax
from jax.experimental import pallas as pl
from jax.experimental.pallas import tpu as pltpu


# --------------------------------------------------------------------------
# Kernel
# --------------------------------------------------------------------------
def _basic_block_kernel(x_ref, w1_ref, b1_ref, w2_ref, b2_ref, o_ref, pad_ref,
                        *, B, H, WC, p, d, mm_dtype, slope=0.2):
    """Fused conv1(+BN+LeakyReLU) -> conv2(+BN) -> +x -> LeakyReLU.

    Shapes (per grid step = B images):
      x_ref   : (B, H, W*C)       row-flattened channels-last images
      w*_ref  : (3*W*C, W*C)      banded conv weights, 3 kh-taps stacked on K
      b*_ref  : (1, W*C)          folded BN bias, tiled along W
      o_ref   : (B, H, W*C)
      pad_ref : (B, H+2p, W*C)    shared row-padded VMEM scratch (f32)
    """
    M = B * H
    K = 3 * WC

    # Zero ONLY the 2*p padding rows, every grid step (NOT under
    # pl.when(pid == 0)) so it stays correct when the 'parallel' grid is
    # split across TensorCores, each with its own scratch.
    zrow = jnp.zeros((B, p, WC), pad_ref.dtype)
    pad_ref[:, pl.ds(0, p), :] = zrow
    pad_ref[:, pl.ds(p + H, p), :] = zrow

    def conv(w_ref):
        # Stack the 3 kernel-row taps along K -> one MXU matmul with
        # K = 3*W*C over M = B*H rows (accumulation happens inside the MXU).
        taps = [pad_ref[:, pl.ds(kh * d, H), :].astype(mm_dtype)
                for kh in range(3)]
        a = jnp.concatenate(taps, axis=-1).reshape(M, K)
        acc = jnp.dot(a, w_ref[...], preferred_element_type=jnp.float32)
        return acc.reshape(B, H, WC)

    x = x_ref[...].astype(jnp.float32)                     # (B, H, W*C)

    # conv1 + BN1 + LeakyReLU(0.2)   (elementwise kept in f32)
    pad_ref[:, pl.ds(p, H), :] = x
    h = conv(w1_ref) + b1_ref[...]
    h = jnp.maximum(h, slope * h)

    # conv2 + BN2 — intermediate never leaves VMEM; scratch is reused for h.
    pad_ref[:, pl.ds(p, H), :] = h
    out = conv(w2_ref) + b2_ref[...]

    out = out + x                                          # residual (f32)
    out = jnp.maximum(out, slope * out)                    # LeakyReLU(0.2)
    o_ref[...] = out.astype(o_ref.dtype)


# --------------------------------------------------------------------------
# Wrapper-side weight preparation (banded conv-as-matmul, BN scale folded)
# --------------------------------------------------------------------------
def _shift_rows(mat, offset, total_rows):
    """Shift `mat` down by `offset` rows (negative = up) within `total_rows`,
    dropping rows that fall outside and zero-filling the rest."""
    if offset >= 0:
        kept = mat[: total_rows - offset]
    else:
        kept = mat[-offset:]
    top = max(offset, 0)
    return jnp.pad(kept, ((top, total_rows - top - kept.shape[0]), (0, 0)))


def _build_stacked_banded_weights(w_hwio, scale, width, pad, dilation, dtype):
    """Fold the BN scale into the conv weights and lay them out as a single
    (3*W*Cin, W*Cout) matrix: for each kernel row kh a banded (W*Cin, W*Cout)
    block, stacked along K in kh order.  A 3x3 conv over a row-flattened
    (H, W*Cin) image then becomes ONE matmul against the 3 row-shifted taps
    concatenated along K.  Taps reading left/right zero padding are dropped
    from the band.

    NOTE: the band is O((W*C)^2); for realistic widths tile W so the band
    only spans a width tile.
    """
    kh_sz, kw_sz, cin, cout = w_hwio.shape
    w = w_hwio.astype(jnp.float32) * scale.astype(jnp.float32)[None, None, None, :]
    eye = jnp.eye(width, dtype=jnp.float32)
    bands = []
    for kh in range(kh_sz):
        band = jnp.zeros((width * cin, width * cout), jnp.float32)
        for kw in range(kw_sz):
            blk = jnp.kron(eye, w[kh, kw])                 # block-diagonal
            band = band + _shift_rows(blk, (kw * dilation - pad) * cin,
                                      width * cin)
        bands.append(band)
    return jnp.concatenate(bands, axis=0).astype(dtype)    # (3*W*Cin, W*Cout)


# --------------------------------------------------------------------------
# Public forward (NHWC, channels-last kept end-to-end)
# --------------------------------------------------------------------------
def basic_block_forward(x_nhwc, params, *, stride=1, pad=1, dilation=1,
                        images_per_step=2, weight_buffers=1,
                        matmul_dtype=jnp.bfloat16):
    """BasicBlock forward on NHWC input (equivalent to the PyTorch NCHW module
    after a layout permute).  Returns NHWC.  For lane-dense stores keep
    W*C a multiple of 128."""
    N, H, W, C = x_nhwc.shape
    if stride != 1:
        raise ValueError("BasicBlock residual add requires stride == 1")
    if params["w1"].shape[-1] != C or params["w2"].shape[-1] != C:
        raise ValueError("BasicBlock residual add requires in_ch == out_ch")
    p = dilation if dilation > 1 else pad
    if p != dilation:
        raise ValueError(
            f"effective padding must equal dilation for the residual add "
            f"(got pad={pad}, dilation={dilation})")

    WC = W * C
    Hp = H + 2 * p
    # Several images per grid step (amortizes per-step overhead and weight
    # loads).  Keep the grid length >= 2 when possible so v7x megacore can
    # still split the 'parallel' axis across its two TensorCores.
    B_blk = math.gcd(N, max(1, int(images_per_step)))

    w1s = _build_stacked_banded_weights(params["w1"], params["scale1"],
                                        W, p, dilation, matmul_dtype)
    w2s = _build_stacked_banded_weights(params["w2"], params["scale2"],
                                        W, p, dilation, matmul_dtype)
    b1 = jnp.tile(params["bias1"].astype(jnp.float32), W).reshape(1, WC)
    b2 = jnp.tile(params["bias2"].astype(jnp.float32), W).reshape(1, WC)

    x_flat = x_nhwc.reshape(N, H, WC)       # free: NHWC is already contiguous

    kernel = functools.partial(_basic_block_kernel, B=B_blk, H=H, WC=WC,
                               p=p, d=dilation, mm_dtype=matmul_dtype)

    # Constant-index operands never need double buffering.
    if weight_buffers is None:
        const_kw = {}
    else:
        const_kw = {"pipeline_mode": pl.Buffered(int(weight_buffers))}

    out_flat = pl.pallas_call(
        kernel,
        out_shape=jax.ShapeDtypeStruct((N, H, WC), x_nhwc.dtype),
        grid_spec=pltpu.PrefetchScalarGridSpec(
            num_scalar_prefetch=0,
            grid=(N // B_blk,),
            in_specs=[
                pl.BlockSpec((B_blk, H, WC), lambda n: (n, 0, 0)),       # x
                pl.BlockSpec((3 * WC, WC), lambda n: (0, 0), **const_kw),  # w1
                pl.BlockSpec((1, WC), lambda n: (0, 0), **const_kw),       # b1
                pl.BlockSpec((3 * WC, WC), lambda n: (0, 0), **const_kw),  # w2
                pl.BlockSpec((1, WC), lambda n: (0, 0), **const_kw),       # b2
            ],
            out_specs=pl.BlockSpec((B_blk, H, WC), lambda n: (n, 0, 0)),
            scratch_shapes=[
                pltpu.VMEM((B_blk, Hp, WC), jnp.float32),  # shared padded buf
            ],
        ),
        compiler_params=pltpu.CompilerParams(
            dimension_semantics=("parallel",)),
    )(x_flat, w1s, b1, w2s, b2)

    return out_flat.reshape(N, H, W, C)


# --------------------------------------------------------------------------
# Reference (pure JAX, PyTorch eval-mode semantics) and self-test
# --------------------------------------------------------------------------
def _fold_bn(gamma, beta, mean, var, eps=1e-5):
    scale = gamma / jnp.sqrt(var + eps)
    return scale, beta - mean * scale


def _reference_forward(x_nhwc, w1_hwio, bn1, w2_hwio, bn2, *, pad, dilation):
    p = dilation if dilation > 1 else pad

    def convbn(x, w, scale, bias):
        y = lax.conv_general_dilated(
            x, w, window_strides=(1, 1), padding=[(p, p), (p, p)],
            rhs_dilation=(dilation, dilation),
            dimension_numbers=("NHWC", "HWIO", "NHWC"))
        return y * scale + bias

    out = convbn(x_nhwc, w1_hwio, *bn1)
    out = jnp.where(out >= 0, out, 0.2 * out)
    out = convbn(out, w2_hwio, *bn2)
    out = out + x_nhwc
    return jnp.where(out >= 0, out, 0.2 * out)


if __name__ == "__main__":
    key = jax.random.PRNGKey(0)
    # W*C = 128 -> lane-dense output stores / full MXU columns; N=4 with
    # 2 images per grid step keeps a 2-long 'parallel' grid for v7x megacore.
    N, H, W, C = 4, 16, 16, 8
    stride, pad, dilation = 1, 1, 1

    keys = jax.random.split(key, 10)
    x = jax.random.normal(keys[0], (N, H, W, C), jnp.float32)        # NHWC

    # Conv weights (PyTorch layout OIHW) -> HWIO once, up front.
    w1_oihw = 0.1 * jax.random.normal(keys[1], (C, C, 3, 3), jnp.float32)
    w2_oihw = 0.1 * jax.random.normal(keys[2], (C, C, 3, 3), jnp.float32)
    w1 = jnp.transpose(w1_oihw, (2, 3, 1, 0))
    w2 = jnp.transpose(w2_oihw, (2, 3, 1, 0))

    # BatchNorm parameters (eval mode / running stats), deterministic.
    gamma1 = 1.0 + 0.1 * jax.random.normal(keys[3], (C,), jnp.float32)
    beta1 = 0.1 * jax.random.normal(keys[4], (C,), jnp.float32)
    mean1 = 0.05 * jax.random.normal(keys[5], (C,), jnp.float32)
    var1 = 1.0 + 0.1 * jax.random.uniform(keys[6], (C,), jnp.float32)
    gamma2 = 1.0 + 0.1 * jax.random.normal(keys[7], (C,), jnp.float32)
    beta2 = 0.1 * jax.random.normal(keys[8], (C,), jnp.float32)
    mean2 = 0.05 * jax.random.normal(keys[9], (C,), jnp.float32)
    var2 = jnp.linspace(0.9, 1.1, C).astype(jnp.float32)

    scale1, bias1 = _fold_bn(gamma1, beta1, mean1, var1)
    scale2, bias2 = _fold_bn(gamma2, beta2, mean2, var2)

    params = {
        "w1": w1, "w2": w2,
        "scale1": scale1, "bias1": bias1,
        "scale2": scale2, "bias2": bias2,
    }

    fwd = jax.jit(functools.partial(basic_block_forward, stride=stride,
                                    pad=pad, dilation=dilation))
    try:
        out = jax.block_until_ready(fwd(x, params))
    except Exception:
        # pl.Buffered(1) (single-buffered constant weights) may be rejected by
        # some jax versions; retry with default (double) buffering.
        fwd = jax.jit(functools.partial(basic_block_forward, stride=stride,
                                        pad=pad, dilation=dilation,
                                        weight_buffers=None))
        out = jax.block_until_ready(fwd(x, params))

    ref = _reference_forward(x, w1, (scale1, bias1), w2, (scale2, bias2),
                             pad=pad, dilation=dilation)
    assert out.shape == ref.shape == (N, H, W, C)
    max_err = float(jnp.max(jnp.abs(out - ref)))
    # bf16 MXU operands (f32 accumulate, f32 elementwise) -> relaxed tolerance.
    assert jnp.allclose(out, ref, atol=5e-2, rtol=2e-2), max_err

    print("KERNEL_OK")
</pallas_src>

<mosaic_0001>
module attributes {stable_mosaic.version = 11 : i64} {
  func.func @_basic_block_kernel(%arg0: i32, %arg1: memref<2x16x128xf32, #tpu.memory_space<vmem>>, %arg2: memref<384x128xbf16, #tpu.memory_space<vmem>>, %arg3: memref<1x128xf32, #tpu.memory_space<vmem>>, %arg4: memref<384x128xbf16, #tpu.memory_space<vmem>>, %arg5: memref<1x128xf32, #tpu.memory_space<vmem>>, %arg6: memref<2x16x128xf32, #tpu.memory_space<vmem>>, %arg7: memref<2x18x128xf32, #tpu.memory_space<vmem>>) attributes {dimension_semantics = [#tpu.dimension_semantics<parallel>], iteration_bounds = array<i64: 2>, scalar_prefetch = 0 : i64, scratch_operands = 1 : i64, tpu.core_type = #tpu.core_type<tc>, window_params = [{transform_indices = @transform_0, window_bounds = array<i64: 2, 16, 128>}, {pipeline_mode = #tpu.pipeline_mode<synchronous>, transform_indices = @transform_1, window_bounds = array<i64: 384, 128>}, {pipeline_mode = #tpu.pipeline_mode<synchronous>, transform_indices = @transform_2, window_bounds = array<i64: 1, 128>}, {pipeline_mode = #tpu.pipeline_mode<synchronous>, transform_indices = @transform_3, window_bounds = array<i64: 384, 128>}, {pipeline_mode = #tpu.pipeline_mode<synchronous>, transform_indices = @transform_4, window_bounds = array<i64: 1, 128>}, {transform_indices = @transform_5, window_bounds = array<i64: 2, 16, 128>}]} {
    %cst = arith.constant 0.000000e+00 : f32
    %0 = vector.broadcast %cst : f32 to vector<2x1x128xf32>
    %c0 = arith.constant 0 : index
    %c0_0 = arith.constant 0 : index
    %c0_1 = arith.constant 0 : index
    %1 = vector.load %arg7[%c0, %c0_0, %c0_1] : memref<2x18x128xf32, #tpu.memory_space<vmem>>, vector<2x1x128xf32>
    tpu.vector_store %arg7[%c0, %c0_0, %c0_1], %0 {strides = array<i32>} : memref<2x18x128xf32, #tpu.memory_space<vmem>>, vector<2x1x128xf32>,
    %c0_2 = arith.constant 0 : index
    %c17 = arith.constant 17 : index
    %c0_3 = arith.constant 0 : index
    %2 = vector.load %arg7[%c0_2, %c17, %c0_3] : memref<2x18x128xf32, #tpu.memory_space<vmem>>, vector<2x1x128xf32>
    tpu.vector_store %arg7[%c0_2, %c17, %c0_3], %0 {strides = array<i32>} : memref<2x18x128xf32, #tpu.memory_space<vmem>>, vector<2x1x128xf32>,
    %c0_4 = arith.constant 0 : index
    %c0_5 = arith.constant 0 : index
    %c0_6 = arith.constant 0 : index
    %3 = vector.load %arg1[%c0_4, %c0_5, %c0_6] : memref<2x16x128xf32, #tpu.memory_space<vmem>>, vector<2x16x128xf32>
    %c0_7 = arith.constant 0 : index
    %c1 = arith.constant 1 : index
    %c0_8 = arith.constant 0 : index
    %4 = vector.load %arg7[%c0_7, %c1, %c0_8] : memref<2x18x128xf32, #tpu.memory_space<vmem>>, vector<2x16x128xf32>
    tpu.vector_store %arg7[%c0_7, %c1, %c0_8], %3 {strides = array<i32>} : memref<2x18x128xf32, #tpu.memory_space<vmem>>, vector<2x16x128xf32>,
    %c0_9 = arith.constant 0 : index
    %c0_10 = arith.constant 0 : index
    %c0_11 = arith.constant 0 : index
    %5 = vector.load %arg7[%c0_9, %c0_10, %c0_11] : memref<2x18x128xf32, #tpu.memory_space<vmem>>, vector<2x16x128xf32>
    %6 = arith.truncf %5 : vector<2x16x128xf32> to vector<2x16x128xbf16>
    %c0_12 = arith.constant 0 : index
    %c1_13 = arith.constant 1 : index
    %c0_14 = arith.constant 0 : index
    %7 = vector.load %arg7[%c0_12, %c1_13, %c0_14] : memref<2x18x128xf32, #tpu.memory_space<vmem>>, vector<2x16x128xf32>
    %8 = arith.truncf %7 : vector<2x16x128xf32> to vector<2x16x128xbf16>
    %c0_15 = arith.constant 0 : index
    %c2 = arith.constant 2 : index
    %c0_16 = arith.constant 0 : index
    %9 = vector.load %arg7[%c0_15, %c2, %c0_16] : memref<2x18x128xf32, #tpu.memory_space<vmem>>, vector<2x16x128xf32>
    %10 = arith.truncf %9 : vector<2x16x128xf32> to vector<2x16x128xbf16>
    %11 = tpu.concatenate %6, %8, %10 in 2 : vector<2x16x128xbf16>, vector<2x16x128xbf16>, vector<2x16x128xbf16> -> vector<2x16x384xbf16>
    %12 = vector.shape_cast %11 : vector<2x16x384xbf16> to vector<32x384xbf16>
    %c0_17 = arith.constant 0 : index
    %c0_18 = arith.constant 0 : index
    %13 = vector.load %arg2[%c0_17, %c0_18] : memref<384x128xbf16, #tpu.memory_space<vmem>>, vector<384x128xbf16>
    %cst_19 = arith.constant dense<0.000000e+00> : vector<32x128xf32>
    %14 = tpu.matmul %12, %13, %cst_19 {dimension_numbers = #tpu.dot_dimension_numbers<[1], [0], [0], [1], [0, 0, 1, 1], [], []>} : vector<32x384xbf16>, vector<384x128xbf16>, vector<32x128xf32> -> vector<32x128xf32>
    %15 = vector.shape_cast %14 : vector<32x128xf32> to vector<2x16x128xf32>
    %c0_20 = arith.constant 0 : index
    %c0_21 = arith.constant 0 : index
    %16 = vector.load %arg3[%c0_20, %c0_21] : memref<1x128xf32, #tpu.memory_space<vmem>>, vector<1x128xf32>
    %17 = vector.shape_cast %16 : vector<1x128xf32> to vector<1x1x128xf32>
    %18 = vector.broadcast %17 : vector<1x1x128xf32> to vector<2x16x128xf32>
    %19 = arith.addf %15, %18 : vector<2x16x128xf32>
    %cst_22 = arith.constant 2.000000e-01 : f32
    %20 = vector.broadcast %cst_22 : f32 to vector<2x16x128xf32>
    %21 = arith.mulf %20, %19 : vector<2x16x128xf32>
    %22 = arith.maximumf %19, %21 : vector<2x16x128xf32>
    %c0_23 = arith.constant 0 : index
    %c1_24 = arith.constant 1 : index
    %c0_25 = arith.constant 0 : index
    %23 = vector.load %arg7[%c0_23, %c1_24, %c0_25] : memref<2x18x128xf32, #tpu.memory_space<vmem>>, vector<2x16x128xf32>
    tpu.vector_store %arg7[%c0_23, %c1_24, %c0_25], %22 {strides = array<i32>} : memref<2x18x128xf32, #tpu.memory_space<vmem>>, vector<2x16x128xf32>,
    %c0_26 = arith.constant 0 : index
    %c0_27 = arith.constant 0 : index
    %c0_28 = arith.constant 0 : index
    %24 = vector.load %arg7[%c0_26, %c0_27, %c0_28] : memref<2x18x128xf32, #tpu.memory_space<vmem>>, vector<2x16x128xf32>
    %25 = arith.truncf %24 : vector<2x16x128xf32> to vector<2x16x128xbf16>
    %c0_29 = arith.constant 0 : index
    %c1_30 = arith.constant 1 : index
    %c0_31 = arith.constant 0 : index
    %26 = vector.load %arg7[%c0_29, %c1_30, %c0_31] : memref<2x18x128xf32, #tpu.memory_space<vmem>>, vector<2x16x128xf32>
    %27 = arith.truncf %26 : vector<2x16x128xf32> to vector<2x16x128xbf16>
    %c0_32 = arith.constant 0 : index
    %c2_33 = arith.constant 2 : index
    %c0_34 = arith.constant 0 : index
    %28 = vector.load %arg7[%c0_32, %c2_33, %c0_34] : memref<2x18x128xf32, #tpu.memory_space<vmem>>, vector<2x16x128xf32>
    %29 = arith.truncf %28 : vector<2x16x128xf32> to vector<2x16x128xbf16>
    %30 = tpu.concatenate %25, %27, %29 in 2 : vector<2x16x128xbf16>, vector<2x16x128xbf16>, vector<2x16x128xbf16> -> vector<2x16x384xbf16>
    %31 = vector.shape_cast %30 : vector<2x16x384xbf16> to vector<32x384xbf16>
    %c0_35 = arith.constant 0 : index
    %c0_36 = arith.constant 0 : index
    %32 = vector.load %arg4[%c0_35, %c0_36] : memref<384x128xbf16, #tpu.memory_space<vmem>>, vector<384x128xbf16>
    %cst_37 = arith.constant dense<0.000000e+00> : vector<32x128xf32>
    %33 = tpu.matmul %31, %32, %cst_37 {dimension_numbers = #tpu.dot_dimension_numbers<[1], [0], [0], [1], [0, 0, 1, 1], [], []>} : vector<32x384xbf16>, vector<384x128xbf16>, vector<32x128xf32> -> vector<32x128xf32>
    %34 = vector.shape_cast %33 : vector<32x128xf32> to vector<2x16x128xf32>
    %c0_38 = arith.constant 0 : index
    %c0_39 = arith.constant 0 : index
    %35 = vector.load %arg5[%c0_38, %c0_39] : memref<1x128xf32, #tpu.memory_space<vmem>>, vector<1x128xf32>
    %36 = vector.shape_cast %35 : vector<1x128xf32> to vector<1x1x128xf32>
    %37 = vector.broadcast %36 : vector<1x1x128xf32> to vector<2x16x128xf32>
    %38 = arith.addf %34, %37 : vector<2x16x128xf32>
    %39 = arith.addf %38, %3 : vector<2x16x128xf32>
    %cst_40 = arith.constant 2.000000e-01 : f32
    %40 = vector.broadcast %cst_40 : f32 to vector<2x16x128xf32>
    %41 = arith.mulf %40, %39 : vector<2x16x128xf32>
    %42 = arith.maximumf %39, %41 : vector<2x16x128xf32>
    %c0_41 = arith.constant 0 : index
    %c0_42 = arith.constant 0 : index
    %c0_43 = arith.constant 0 : index
    %43 = vector.load %arg6[%c0_41, %c0_42, %c0_43] : memref<2x16x128xf32, #tpu.memory_space<vmem>>, vector<2x16x128xf32>
    tpu.vector_store %arg6[%c0_41, %c0_42, %c0_43], %42 {strides = array<i32>} : memref<2x16x128xf32, #tpu.memory_space<vmem>>, vector<2x16x128xf32>,
    return
  }
  func.func @transform_0(%arg0: i32) -> (i32, i32, i32) {
    %c0_i32 = arith.constant 0 : i32
    %c0_i32_0 = arith.constant 0 : i32
    %c0_i32_1 = arith.constant 0 : i32
    return %arg0, %c0_i32, %c0_i32_0 : i32, i32, i32
  }
  func.func @transform_1(%arg0: i32) -> (i32, i32) {
    %c0_i32 = arith.constant 0 : i32
    %c0_i32_0 = arith.constant 0 : i32
    %c0_i32_1 = arith.constant 0 : i32
    return %c0_i32, %c0_i32_0 : i32, i32
  }
  func.func @transform_2(%arg0: i32) -> (i32, i32) {
    %c0_i32 = arith.constant 0 : i32
    %c0_i32_0 = arith.constant 0 : i32
    %c0_i32_1 = arith.constant 0 : i32
    return %c0_i32, %c0_i32_0 : i32, i32
  }
  func.func @transform_3(%arg0: i32) -> (i32, i32) {
    %c0_i32 = arith.constant 0 : i32
    %c0_i32_0 = arith.constant 0 : i32
    %c0_i32_1 = arith.constant 0 : i32
    return %c0_i32, %c0_i32_0 : i32, i32
  }
  func.func @transform_4(%arg0: i32) -> (i32, i32) {
    %c0_i32 = arith.constant 0 : i32
    %c0_i32_0 = arith.constant 0 : i32
    %c0_i32_1 = arith.constant 0 : i32
    return %c0_i32, %c0_i32_0 : i32, i32
  }
  func.func @transform_5(%arg0: i32) -> (i32, i32, i32) {
    %c0_i32 = arith.constant 0 : i32
    %c0_i32_0 = arith.constant 0 : i32
    %c0_i32_1 = arith.constant 0 : i32
    return %arg0, %c0_i32, %c0_i32_0 : i32, i32, i32
  }
}

module attributes {stable_mosaic.version = 11 : i64} {
  func.func @_basic_block_kernel(%arg0: i32, %arg1: memref<2x16x128xf32, #tpu.memory_space<vmem>>, %arg2: memref<384x128xbf16, #tpu.memory_space<vmem>>, %arg3: memref<1x128xf32, #tpu.memory_space<vmem>>, %arg4: memref<384x128xbf16, #tpu.memory_space<vmem>>, %arg5: memref<1x128xf32, #tpu.memory_space<vmem>>, %arg6: memref<2x16x128xf32, #tpu.memory_space<vmem>>, %arg7: memref<2x18x128xf32, #tpu.memory_space<vmem>>) attributes {dimension_semantics = [#tpu.dimension_semantics<parallel>], iteration_bounds = array<i64: 2>, scalar_prefetch = 0 : i64, scratch_operands = 1 : i64, tpu.core_type = #tpu.core_type<tc>, window_params = [{transform_indices = @transform_0, window_bounds = array<i64: 2, 16, 128>}, {pipeline_mode = #tpu.pipeline_mode<synchronous>, transform_indices = @transform_1, window_bounds = array<i64: 384, 128>}, {pipeline_mode = #tpu.pipeline_mode<synchronous>, transform_indices = @transform_2, window_bounds = array<i64: 1, 128>}, {pipeline_mode = #tpu.pipeline_mode<synchronous>, transform_indices = @transform_3, window_bounds = array<i64: 384, 128>}, {pipeline_mode = #tpu.pipeline_mode<synchronous>, transform_indices = @transform_4, window_bounds = array<i64: 1, 128>}, {transform_indices = @transform_5, window_bounds = array<i64: 2, 16, 128>}]} {
    %cst = arith.constant 0.000000e+00 : f32
    %0 = vector.broadcast %cst : f32 to vector<2x1x128xf32>
    %c0 = arith.constant 0 : index
    %c0_0 = arith.constant 0 : index
    %c0_1 = arith.constant 0 : index
    %1 = vector.load %arg7[%c0, %c0_0, %c0_1] : memref<2x18x128xf32, #tpu.memory_space<vmem>>, vector<2x1x128xf32>
    tpu.vector_store %arg7[%c0, %c0_0, %c0_1], %0 {strides = array<i32>} : memref<2x18x128xf32, #tpu.memory_space<vmem>>, vector<2x1x128xf32>,
    %c0_2 = arith.constant 0 : index
    %c17 = arith.constant 17 : index
    %c0_3 = arith.constant 0 : index
    %2 = vector.load %arg7[%c0_2, %c17, %c0_3] : memref<2x18x128xf32, #tpu.memory_space<vmem>>, vector<2x1x128xf32>
    tpu.vector_store %arg7[%c0_2, %c17, %c0_3], %0 {strides = array<i32>} : memref<2x18x128xf32, #tpu.memory_space<vmem>>, vector<2x1x128xf32>,
    %c0_4 = arith.constant 0 : index
    %c0_5 = arith.constant 0 : index
    %c0_6 = arith.constant 0 : index
    %3 = vector.load %arg1[%c0_4, %c0_5, %c0_6] : memref<2x16x128xf32, #tpu.memory_space<vmem>>, vector<2x16x128xf32>
    %c0_7 = arith.constant 0 : index
    %c1 = arith.constant 1 : index
    %c0_8 = arith.constant 0 : index
    %4 = vector.load %arg7[%c0_7, %c1, %c0_8] : memref<2x18x128xf32, #tpu.memory_space<vmem>>, vector<2x16x128xf32>
    tpu.vector_store %arg7[%c0_7, %c1, %c0_8], %3 {strides = array<i32>} : memref<2x18x128xf32, #tpu.memory_space<vmem>>, vector<2x16x128xf32>,
    %c0_9 = arith.constant 0 : index
    %c0_10 = arith.constant 0 : index
    %c0_11 = arith.constant 0 : index
    %5 = vector.load %arg7[%c0_9, %c0_10, %c0_11] : memref<2x18x128xf32, #tpu.memory_space<vmem>>, vector<2x16x128xf32>
    %6 = arith.truncf %5 : vector<2x16x128xf32> to vector<2x16x128xbf16>
    %c0_12 = arith.constant 0 : index
    %c1_13 = arith.constant 1 : index
    %c0_14 = arith.constant 0 : index
    %7 = vector.load %arg7[%c0_12, %c1_13, %c0_14] : memref<2x18x128xf32, #tpu.memory_space<vmem>>, vector<2x16x128xf32>
    %8 = arith.truncf %7 : vector<2x16x128xf32> to vector<2x16x128xbf16>
    %c0_15 = arith.constant 0 : index
    %c2 = arith.constant 2 : index
    %c0_16 = arith.constant 0 : index
    %9 = vector.load %arg7[%c0_15, %c2, %c0_16] : memref<2x18x128xf32, #tpu.memory_space<vmem>>, vector<2x16x128xf32>
    %10 = arith.truncf %9 : vector<2x16x128xf32> to vector<2x16x128xbf16>
    %11 = tpu.concatenate %6, %8, %10 in 2 : vector<2x16x128xbf16>, vector<2x16x128xbf16>, vector<2x16x128xbf16> -> vector<2x16x384xbf16>
    %12 = vector.shape_cast %11 : vector<2x16x384xbf16> to vector<32x384xbf16>
    %c0_17 = arith.constant 0 : index
    %c0_18 = arith.constant 0 : index
    %13 = vector.load %arg2[%c0_17, %c0_18] : memref<384x128xbf16, #tpu.memory_space<vmem>>, vector<384x128xbf16>
    %cst_19 = arith.constant dense<0.000000e+00> : vector<32x128xf32>
    %14 = tpu.matmul %12, %13, %cst_19 {dimension_numbers = #tpu.dot_dimension_numbers<[1], [0], [0], [1], [0, 0, 1, 1], [], []>} : vector<32x384xbf16>, vector<384x128xbf16>, vector<32x128xf32> -> vector<32x128xf32>
    %15 = vector.shape_cast %14 : vector<32x128xf32> to vector<2x16x128xf32>
    %c0_20 = arith.constant 0 : index
    %c0_21 = arith.constant 0 : index
    %16 = vector.load %arg3[%c0_20, %c0_21] : memref<1x128xf32, #tpu.memory_space<vmem>>, vector<1x128xf32>
    %17 = vector.shape_cast %16 : vector<1x128xf32> to vector<1x1x128xf32>
    %18 = vector.broadcast %17 : vector<1x1x128xf32> to vector<2x16x128xf32>
    %19 = arith.addf %15, %18 : vector<2x16x128xf32>
    %cst_22 = arith.constant 2.000000e-01 : f32
    %20 = vector.broadcast %cst_22 : f32 to vector<2x16x128xf32>
    %21 = arith.mulf %20, %19 : vector<2x16x128xf32>
    %22 = arith.maximumf %19, %21 : vector<2x16x128xf32>
    %c0_23 = arith.constant 0 : index
    %c1_24 = arith.constant 1 : index
    %c0_25 = arith.constant 0 : index
    %23 = vector.load %arg7[%c0_23, %c1_24, %c0_25] : memref<2x18x128xf32, #tpu.memory_space<vmem>>, vector<2x16x128xf32>
    tpu.vector_store %arg7[%c0_23, %c1_24, %c0_25], %22 {strides = array<i32>} : memref<2x18x128xf32, #tpu.memory_space<vmem>>, vector<2x16x128xf32>,
    %c0_26 = arith.constant 0 : index
    %c0_27 = arith.constant 0 : index
    %c0_28 = arith.constant 0 : index
    %24 = vector.load %arg7[%c0_26, %c0_27, %c0_28] : memref<2x18x128xf32, #tpu.memory_space<vmem>>, vector<2x16x128xf32>
    %25 = arith.truncf %24 : vector<2x16x128xf32> to vector<2x16x128xbf16>
    %c0_29 = arith.constant 0 : index
    %c1_30 = arith.constant 1 : index
    %c0_31 = arith.constant 0 : index
    %26 = vector.load %arg7[%c0_29, %c1_30, %c0_31] : memref<2x18x128xf32, #tpu.memory_space<vmem>>, vector<2x16x128xf32>
    %27 = arith.truncf %26 : vector<2x16x128xf32> to vector<2x16x128xbf16>
    %c0_32 = arith.constant 0 : index
    %c2_33 = arith.constant 2 : index
    %c0_34 = arith.constant 0 : index
    %28 = vector.load %arg7[%c0_32, %c2_33, %c0_34] : memref<2x18x128xf32, #tpu.memory_space<vmem>>, vector<2x16x128xf32>
    %29 = arith.truncf %28 : vector<2x16x128xf32> to vector<2x16x128xbf16>
    %30 = tpu.concatenate %25, %27, %29 in 2 : vector<2x16x128xbf16>, vector<2x16x128xbf16>, vector<2x16x128xbf16> -> vector<2x16x384xbf16>
    %31 = vector.shape_cast %30 : vector<2x16x384xbf16> to vector<32x384xbf16>
    %c0_35 = arith.constant 0 : index
    %c0_36 = arith.constant 0 : index
    %32 = vector.load %arg4[%c0_35, %c0_36] : memref<384x128xbf16, #tpu.memory_space<vmem>>, vector<384x128xbf16>
    %cst_37 = arith.constant dense<0.000000e+00> : vector<32x128xf32>
    %33 = tpu.matmul %31, %32, %cst_37 {dimension_numbers = #tpu.dot_dimension_numbers<[1], [0], [0], [1], [0, 0, 1, 1], [], []>} : vector<32x384xbf16>, vector<384x128xbf16>, vector<32x128xf32> -> vector<32x128xf32>
    %34 = vector.shape_cast %33 : vector<32x128xf32> to vector<2x16x128xf32>
    %c0_38 = arith.constant 0 : index
    %c0_39 = arith.constant 0 : index
    %35 = vector.load %arg5[%c0_38, %c0_39] : memref<1x128xf32, #tpu.memory_space<vmem>>, vector<1x128xf32>
    %36 = vector.shape_cast %35 : vector<1x128xf32> to vector<1x1x128xf32>
    %37 = vector.broadcast %36 : vector<1x1x128xf32> to vector<2x16x128xf32>
    %38 = arith.addf %34, %37 : vector<2x16x128xf32>
    %39 = arith.addf %38, %3 : vector<2x16x128xf32>
    %cst_40 = arith.constant 2.000000e-01 : f32
    %40 = vector.broadcast %cst_40 : f32 to vector<2x16x128xf32>
    %41 = arith.mulf %40, %39 : vector<2x16x128xf32>
    %42 = arith.maximumf %39, %41 : vector<2x16x128xf32>
    %c0_41 = arith.constant 0 : index
    %c0_42 = arith.constant 0 : index
    %c0_43 = arith.constant 0 : index
    %43 = vector.load %arg6[%c0_41, %c0_42, %c0_43] : memref<2x16x128xf32, #tpu.memory_space<vmem>>, vector<2x16x128xf32>
    tpu.vector_store %arg6[%c0_41, %c0_42, %c0_43], %42 {strides = array<i32>} : memref<2x16x128xf32, #tpu.memory_space<vmem>>, vector<2x16x128xf32>,
    return
  }
  func.func @transform_0(%arg0: i32) -> (i32, i32, i32) {
    %c0_i32 = arith.constant 0 : i32
    %c0_i32_0 = arith.constant 0 : i32
    %c0_i32_1 = arith.constant 0 : i32
    return %arg0, %c0_i32, %c0_i32_0 : i32, i32, i32
  }
  func.func @transform_1(%arg0: i32) -> (i32, i32) {
    %c0_i32 = arith.constant 0 : i32
    %c0_i32_0 = arith.constant 0 : i32
    %c0_i32_1 = arith.constant 0 : i32
    return %c0_i32, %c0_i32_0 : i32, i32
  }
  func.func @transform_2(%arg0: i32) -> (i32, i32) {
    %c0_i32 = arith.constant 0 : i32
    %c0_i32_0 = arith.constant 0 : i32
    %c0_i32_1 = arith.constant 0 : i32
    return %c0_i32, %c0_i32_0 : i32, i32
  }
  func.func @transform_3(%arg0: i32) -> (i32, i32) {
    %c0_i32 = arith.constant 0 : i32
    %c0_i32_0 = arith.constant 0 : i32
    %c0_i32_1 = arith.constant 0 : i32
    return %c0_i32, %c0_i32_0 : i32, i32
  }
  func.func @transform_4(%arg0: i32) -> (i32, i32) {
    %c0_i32 = arith.constant 0 : i32
    %c0_i32_0 = arith.constant 0 : i32
    %c0_i32_1 = arith.constant 0 : i32
    return %c0_i32, %c0_i32_0 : i32, i32
  }
  func.func @transform_5(%arg0: i32) -> (i32, i32, i32) {
    %c0_i32 = arith.constant 0 : i32
    %c0_i32_0 = arith.constant 0 : i32
    %c0_i32_1 = arith.constant 0 : i32
    return %arg0, %c0_i32, %c0_i32_0 : i32, i32, i32
  }
}

</mosaic_0001>

<llo_original>
// kernel: tile.13
$region0: #{tile.13}
  #allocation2 [shape = 's32[1]{0}', space=sflag, size = 0x4, scoped, tag = 'scoped memory for tile.13']
  %s0 = inlined_call_operand.hbm [shape: f32[8], index: 0, kind: input, shape index: {}]
  %s1 = inlined_call_operand.vmem [shape: f32[16,8], index: 1, kind: output, shape index: {}]
  $region1: #{tile.13} parent=0
    #allocation0 [shape = 'u8[512]{0}', space=vmem, size = 0x400, scoped, tag = 'operand span for operand 0']
    #allocation1 [shape = 's32[1]{0}', space=sflag, size = 0x4, scoped, tag = 'scoped memory for tile.13']
    %2 = vsyncpa [#allocation1], 0
    // Predicated region
    $region2: #{tile.13} parent=1 // pred_check
      _
    $region3: #{tile.13} parent=1 // pred_check_branch
      %4 = sbr.rel (0) target = $region5
    $region4: #{tile.13} parent=1 // pred_region
      %s6 = ssub.s32 16, 16
      %7 = vsyncadd [#allocation1], %s6
      %s9 = sshll.u32 [#allocation0], 4
      %s10 = int_to_ptr.vmem [resolvable:$true] %s9
      %12 = dma.hbm_to_vmem [thread:$0]  %s0, 16, %s10, [#allocation1]
    $region5: #{tile.13} parent=1 // pred_fallthru
      _
    // Predicated region
    $region6: #{tile.13} parent=1 // pred_check
      _
    $region7: #{tile.13} parent=1 // pred_check_branch
      %14 = sbr.rel (0) target = $region9
    $region8: #{tile.13} parent=1 // pred_region
      %15 = dma.done [#allocation1], 16
    $region9: #{tile.13} parent=1 // pred_fallthru
      _
    %v16 = vld [vmem:[#allocation0] ss:$0 sm:$0xff]
    %17 = vst [vmem:[%s1] sm:$0xff] %v16
    %s18 = scalar_lea.vmem %s1, 8
    %19 = vst [vmem:[%s18] sm:$0xff] %v16
    %20 = vsyncpa [#allocation1], 1

// kernel: tile.14
$region0: #{tile.14}
  %s0 = inlined_call_operand.vmem [shape: f32[16,8], index: 0, kind: input, shape index: {}]
  %s1 = inlined_call_operand.vmem [shape: f32[1,128], index: 1, kind: output, shape index: {}]
  $region1: #{tile.14} parent=0
    #allocation0 [shape = 'u8[4096]{0}', space=vmem, size = 0x1000, scoped, tag = 'scoped mem for output reshape']
    %v2 = vld [vmem:[%s0] sm:$0x1]
    %vm3 = vcmask 64512
    %4 = vst.msk [vmem:[#allocation0] sm:$0x1] %vm3, %v2
    %s5 = scalar_lea.vmem %s0, 15
    %v6 = vld [vmem:[%s5] sm:$0x1]
    %7 = vrot.lane.b32.xlu0 %v6, 120
    %v8 = vpop.permute.xlu0 %7
    %vm9 = vcmask 1048512
    %10 = vst.msk [vmem:[#allocation0] sm:$0x1] %vm9, %v8
    %s11 = scalar_lea.vmem %s0, 14
    %v12 = vld [vmem:[%s11] sm:$0x1]
    %13 = vrot.lane.b32.xlu0 %v12, 112
    %v14 = vpop.permute.xlu0 %13
    %vm15 = vcmask 982912
    %16 = vst.msk [vmem:[#allocation0] sm:$0x1] %vm15, %v14
    %s17 = scalar_lea.vmem %s0, 13
    %v18 = vld [vmem:[%s17] sm:$0x1]
    %19 = vrot.lane.b32.xlu0 %v18, 104
    %v20 = vpop.permute.xlu0 %19
    %vm21 = vcmask 917312
    %22 = vst.msk [vmem:[#allocation0] sm:$0x1] %vm21, %v20
    %s23 = scalar_lea.vmem %s0, 12
    %v24 = vld [vmem:[%s23] sm:$0x1]
    %25 = vrot.lane.b32.xlu0 %v24, 96
    %v26 = vpop.permute.xlu0 %25
    %vm27 = vcmask 851712
    %28 = vst.msk [vmem:[#allocation0] sm:$0x1] %vm27, %v26
    %s29 = scalar_lea.vmem %s0, 11
    %v30 = vld [vmem:[%s29] sm:$0x1]
    %31 = vrot.lane.b32.xlu0 %v30, 88
    %v32 = vpop.permute.xlu0 %31
    %vm33 = vcmask 786112
    %34 = vst.msk [vmem:[#allocation0] sm:$0x1] %vm33, %v32
    %s35 = scalar_lea.vmem %s0, 10
    %v36 = vld [vmem:[%s35] sm:$0x1]
    %37 = vrot.lane.b32.xlu0 %v36, 80
    %v38 = vpop.permute.xlu0 %37
    %vm39 = vcmask 720512
    %40 = vst.msk [vmem:[#allocation0] sm:$0x1] %vm39, %v38
    %s41 = scalar_lea.vmem %s0, 9
    %v42 = vld [vmem:[%s41] sm:$0x1]
    %43 = vrot.lane.b32.xlu0 %v42, 72
    %v44 = vpop.permute.xlu0 %43
    %vm45 = vcmask 654912
    %46 = vst.msk [vmem:[#allocation0] sm:$0x1] %vm45, %v44
    %s47 = scalar_lea.vmem %s0, 8
    %v48 = vld [vmem:[%s47] sm:$0x1]
    %49 = vrot.lane.b32.xlu0 %v48, 64
    %v50 = vpop.permute.xlu0 %49
    %vm51 = vcmask 589312
    %52 = vst.msk [vmem:[#allocation0] sm:$0x1] %vm51, %v50
    %s53 = scalar_lea.vmem %s0, 7
    %v54 = vld [vmem:[%s53] sm:$0x1]
    %55 = vrot.lane.b32.xlu0 %v54, 56
    %v56 = vpop.permute.xlu0 %55
    %vm57 = vcmask 523712
    %58 = vst.msk [vmem:[#allocation0] sm:$0x1] %vm57, %v56
    %s59 = scalar_lea.vmem %s0, 6
    %v60 = vld [vmem:[%s59] sm:$0x1]
    %61 = vrot.lane.b32.xlu0 %v60, 48
    %v62 = vpop.permute.xlu0 %61
    %vm63 = vcmask 458112
    %64 = vst.msk [vmem:[#allocation0] sm:$0x1] %vm63, %v62
    %s65 = scalar_lea.vmem %s0, 5
    %v66 = vld [vmem:[%s65] sm:$0x1]
    %67 = vrot.lane.b32.xlu0 %v66, 40
    %v68 = vpop.permute.xlu0 %67
    %vm69 = vcmask 392512
    %70 = vst.msk [vmem:[#allocation0] sm:$0x1] %vm69, %v68
    %s71 = scalar_lea.vmem %s0, 4
    %v72 = vld [vmem:[%s71] sm:$0x1]
    %73 = vrot.lane.b32.xlu0 %v72, 32
    %v74 = vpop.permute.xlu0 %73
    %vm75 = vcmask 326912
    %76 = vst.msk [vmem:[#allocation0] sm:$0x1] %vm75, %v74
    %s77 = scalar_lea.vmem %s0, 3
    %v78 = vld [vmem:[%s77] sm:$0x1]
    %79 = vrot.lane.b32.xlu0 %v78, 24
    %v80 = vpop.permute.xlu0 %79
    %vm81 = vcmask 261312
    %82 = vst.msk [vmem:[#allocation0] sm:$0x1] %vm81, %v80
    %s83 = scalar_lea.vmem %s0, 2
    %v84 = vld [vmem:[%s83] sm:$0x1]
    %85 = vrot.lane.b32.xlu0 %v84, 16
    %v86 = vpop.permute.xlu0 %85
    %vm87 = vcmask 195712
    %88 = vst.msk [vmem:[#allocation0] sm:$0x1] %vm87, %v86
    %s89 = scalar_lea.vmem %s0, 1
    %v90 = vld [vmem:[%s89] sm:$0x1]
    %91 = vrot.lane.b32.xlu0 %v90, 8
    %v92 = vpop.permute.xlu0 %91
    %vm93 = vcmask 130112
    %94 = vst.msk [vmem:[#allocation0] sm:$0x1] %vm93, %v92
    %s96 = sshll.u32 1, 1
    %s97 = ssub.s32 %s96, 1
    %v99 = vld [vmem:[#allocation0] sm:%s97]
    %s100 = sshll.u32 1, 1
    %s101 = ssub.s32 %s100, 1
    %102 = vst [vmem:[%s1] sm:%s101] %v99

// kernel: basic_block_forward.1
$region0: #{basic_block_forward.1}
  #allocation0 [shape = 'u32[]', space=smem, size = 0x4, offset = 0x4, fixed_abs, tag = 'smem constant byte address 0x4 - core index']
  #allocation1 [shape = 'u32[144,128]{1,0:T(1,128)}', space=vmem, size = 0x12000, scoped, tag = 'internal scratch']
  #allocation2 [shape = 'f32[2,18,128]{2,1,0:T(8,128)}', space=vmem, size = 0x6000, scoped, tag = 'scratch operand']
  %s0 = inlined_call_operand.vmem [shape: f32[4,16,128], index: 0, kind: input, shape index: {}]
  %s1 = inlined_call_operand.vmem [shape: bf16[384,128], index: 1, kind: input, shape index: {}]
  %s2 = inlined_call_operand.vmem [shape: f32[1,128], index: 2, kind: input, shape index: {}]
  %s3 = inlined_call_operand.vmem [shape: bf16[384,128], index: 3, kind: input, shape index: {}]
  %s4 = inlined_call_operand.vmem [shape: f32[1,128], index: 4, kind: input, shape index: {}]
  %s5 = inlined_call_operand.vmem [shape: f32[4,16,128], index: 5, kind: output, shape index: {}]
  %s6 = sld [smem:[#allocation0]]
  $region53: #{basic_block_forward.1} parent=0
    _
  %s8 = ssub.s32 1, %s6
  %s9 = scalar_select 0, %s8, %s6
  loop: start=0, step=1, limit=4
  $region2: #{basic_block_forward.1} parent=0 // loop_pre_header
    _
  $region3: #{basic_block_forward.1} parent=0 // loop_header
    %s11 = sphi 0, %s15
    %p12 = scmp.ge.s32.totalorder %s11, 4
    %s21 = sphi 0, %s23
    %s24 = sphi 0, %s21
    %s25 = sphi 0, %s24
    %s41 = sphi 0, %s25
    %s45 = sphi 0, %s45
    %s47 = sphi 0, %s45
    %s48 = sphi 0, %s47
    %s62 = sphi 0, %s48
    %s66 = sphi 0, %s66
    %s68 = sphi 0, %s66
    %s69 = sphi 0, %s68
    %s83 = sphi 0, %s69
    %s87 = sphi 0, %s87
    %s89 = sphi 0, %s87
    %s90 = sphi 0, %s89
    %s104 = sphi 0, %s90
    %s108 = sphi 0, %s108
    %s110 = sphi 0, %s108
    %s111 = sphi 0, %s110
    %s125 = sphi 0, %s111
    %s131 = sphi 0, %s133
    %s134 = sphi 0, %s131
    %s135 = sphi 0, %s134
    %s151 = sphi 0, %s135
  $region4: #{basic_block_forward.1} parent=0 // loop_header_branch
    %14 = sbr.rel (%p12) target = $region8
  $region5: #{basic_block_forward.1} parent=0 // loop_body
    %s16 = ssub.s32 %s11, 1
    %s17 = ssub.s32 %s11, 2
    %s18 = sadd.s32 %s11, 1
    %s19 = ssub.s32 %s11, %s18
    %p20 = scmp.eq.s32.totalorder %s19, 0
    %s22 = sadd.s32 %s21, 1
    %s23 = scalar_select %p20, %s21, %s22
    %p26 = pneg %p20
    %p27 = scmp.eq.s32.totalorder %s11, 1
    %p28 = por %p26, %p27
    %p29 = scmp.ne.s32.totalorder %s21, %s24
    %p30 = scmp.eq.s32.totalorder %s11, 0
    %p31 = por %p29, %p30
    %p32 = scmp.ne.s32.totalorder %s21, %s24
    %p33 = scmp.eq.s32.totalorder %s16, 1
    %p34 = por %p32, %p33
    %p35 = scmp.ne.s32.totalorder %s24, %s25
    %p36 = scmp.eq.s32.totalorder %s16, 0
    %p37 = por %p35, %p36
    %p38 = scmp.ne.s32.totalorder %s24, %s25
    %p39 = scmp.eq.s32.totalorder %s17, 1
    %p40 = por %p38, %p39
    %p42 = scmp.ne.s32.totalorder %s25, %s41
    %p43 = scmp.eq.s32.totalorder %s17, 0
    %p44 = por %p42, %p43
    %s46 = sadd.s32 %s45, 1
    %p49 = scmp.eq.s32.totalorder %s11, 1
    %p50 = scmp.ne.s32.totalorder %s45, %s47
    %p51 = scmp.eq.s32.totalorder %s11, 0
    %p52 = por %p50, %p51
    %p53 = scmp.ne.s32.totalorder %s45, %s47
    %p54 = scmp.eq.s32.totalorder %s16, 1
    %p55 = por %p53, %p54
    %p56 = scmp.ne.s32.totalorder %s47, %s48
    %p57 = scmp.eq.s32.totalorder %s16, 0
    %p58 = por %p56, %p57
    %p59 = scmp.ne.s32.totalorder %s47, %s48
    %p60 = scmp.eq.s32.totalorder %s17, 1
    %p61 = por %p59, %p60
    %p63 = scmp.ne.s32.totalorder %s48, %s62
    %p64 = scmp.eq.s32.totalorder %s17, 0
    %p65 = por %p63, %p64
    %s67 = sadd.s32 %s66, 1
    %p70 = scmp.eq.s32.totalorder %s11, 1
    %p71 = scmp.ne.s32.totalorder %s66, %s68
    %p72 = scmp.eq.s32.totalorder %s11, 0
    %p73 = por %p71, %p72
    %p74 = scmp.ne.s32.totalorder %s66, %s68
    %p75 = scmp.eq.s32.totalorder %s16, 1
    %p76 = por %p74, %p75
    %p77 = scmp.ne.s32.totalorder %s68, %s69
    %p78 = scmp.eq.s32.totalorder %s16, 0
    %p79 = por %p77, %p78
    %p80 = scmp.ne.s32.totalorder %s68, %s69
    %p81 = scmp.eq.s32.totalorder %s17, 1
    %p82 = por %p80, %p81
    %p84 = scmp.ne.s32.totalorder %s69, %s83
    %p85 = scmp.eq.s32.totalorder %s17, 0
    %p86 = por %p84, %p85
    %s88 = sadd.s32 %s87, 1
    %p91 = scmp.eq.s32.totalorder %s11, 1
    %p92 = scmp.ne.s32.totalorder %s87, %s89
    %p93 = scmp.eq.s32.totalorder %s11, 0
    %p94 = por %p92, %p93
    %p95 = scmp.ne.s32.totalorder %s87, %s89
    %p96 = scmp.eq.s32.totalorder %s16, 1
    %p97 = por %p95, %p96
    %p98 = scmp.ne.s32.totalorder %s89, %s90
    %p99 = scmp.eq.s32.totalorder %s16, 0
    %p100 = por %p98, %p99
    %p101 = scmp.ne.s32.totalorder %s89, %s90
    %p102 = scmp.eq.s32.totalorder %s17, 1
    %p103 = por %p101, %p102
    %p105 = scmp.ne.s32.totalorder %s90, %s104
    %p106 = scmp.eq.s32.totalorder %s17, 0
    %p107 = por %p105, %p106
    %s109 = sadd.s32 %s108, 1
    %p112 = scmp.eq.s32.totalorder %s11, 1
    %p113 = scmp.ne.s32.totalorder %s108, %s110
    %p114 = scmp.eq.s32.totalorder %s11, 0
    %p115 = por %p113, %p114
    %p116 = scmp.ne.s32.totalorder %s108, %s110
    %p117 = scmp.eq.s32.totalorder %s16, 1
    %p118 = por %p116, %p117
    %p119 = scmp.ne.s32.totalorder %s110, %s111
    %p120 = scmp.eq.s32.totalorder %s16, 0
    %p121 = por %p119, %p120
    %p122 = scmp.ne.s32.totalorder %s110, %s111
    %p123 = scmp.eq.s32.totalorder %s17, 1
    %p124 = por %p122, %p123
    %p126 = scmp.ne.s32.totalorder %s111, %s125
    %p127 = scmp.eq.s32.totalorder %s17, 0
    %p128 = por %p126, %p127
    %s129 = ssub.s32 %s11, %s18
    %p130 = scmp.eq.s32.totalorder %s129, 0
    %s132 = sadd.s32 %s131, 1
    %s133 = scalar_select %p130, %s131, %s132
    %p136 = pneg %p130
    %p137 = scmp.eq.s32.totalorder %s11, 1
    %p138 = por %p136, %p137
    %p139 = scmp.ne.s32.totalorder %s131, %s134
    %p140 = scmp.eq.s32.totalorder %s11, 0
    %p141 = por %p139, %p140
    %p142 = scmp.ne.s32.totalorder %s131, %s134
    %p143 = scmp.eq.s32.totalorder %s16, 1
    %p144 = por %p142, %p143
    %p145 = scmp.ne.s32.totalorder %s134, %s135
    %p146 = scmp.eq.s32.totalorder %s16, 0
    %p147 = por %p145, %p146
    %p148 = scmp.ne.s32.totalorder %s134, %s135
    %p149 = scmp.eq.s32.totalorder %s17, 1
    %p150 = por %p148, %p149
    %p152 = scmp.ne.s32.totalorder %s135, %s151
    %p153 = scmp.eq.s32.totalorder %s17, 0
    %p154 = por %p152, %p153
    %p155 = scmp.le.s32.totalorder 1, %s11
    %p156 = scmp.lt.s32.totalorder %s11, 3
    %p157 = pnand %p155, %p156
    %p158 = pneg %p157
    // Predicated region
    $region9: #{basic_block_forward.1} parent=5 // pred_check
      _
    $region10: #{basic_block_forward.1} parent=5 // pred_check_branch
      %160 = sbr.rel (%p157) target = $region12
    $region11: #{basic_block_forward.1} parent=5 // pred_region
      %s161 = ssub.s32 %s11, 1
      // Predicated region
      $region13: #{basic_block_forward.1} parent=11 // pred_check
        %p162 = pneg %p58
      $region14: #{basic_block_forward.1} parent=11 // pred_check_branch
        %164 = sbr.rel (%p162) target = $region16
      $region15: #{basic_block_forward.1} parent=11 // pred_region
        _
      $region16: #{basic_block_forward.1} parent=11 // pred_fallthru
        _
      // Predicated region
      $region17: #{basic_block_forward.1} parent=11 // pred_check
        %p165 = pneg %p79
      $region18: #{basic_block_forward.1} parent=11 // pred_check_branch
        %167 = sbr.rel (%p165) target = $region20
      $region19: #{basic_block_forward.1} parent=11 // pred_region
        _
      $region20: #{basic_block_forward.1} parent=11 // pred_fallthru
        _
      // Predicated region
      $region21: #{basic_block_forward.1} parent=11 // pred_check
        %p168 = pneg %p100
      $region22: #{basic_block_forward.1} parent=11 // pred_check_branch
        %170 = sbr.rel (%p168) target = $region24
      $region23: #{basic_block_forward.1} parent=11 // pred_region
        _
      $region24: #{basic_block_forward.1} parent=11 // pred_fallthru
        _
      // Predicated region
      $region25: #{basic_block_forward.1} parent=11 // pred_check
        %p171 = pneg %p121
      $region26: #{basic_block_forward.1} parent=11 // pred_check_branch
        %173 = sbr.rel (%p171) target = $region28
      $region27: #{basic_block_forward.1} parent=11 // pred_region
        _
      $region28: #{basic_block_forward.1} parent=11 // pred_fallthru
        _
    $region12: #{basic_block_forward.1} parent=5 // pred_fallthru
      _
    %p174 = scmp.lt.s32.totalorder %s11, 2
    // Predicated region
    $region29: #{basic_block_forward.1} parent=5 // pred_check
      %p175 = pneg %p174
    $region30: #{basic_block_forward.1} parent=5 // pred_check_branch
      %177 = sbr.rel (%p175) target = $region32
    $region31: #{basic_block_forward.1} parent=5 // pred_region
      // Predicated region
      $region33: #{basic_block_forward.1} parent=31 // pred_check
        %p178 = pneg %p31
      $region34: #{basic_block_forward.1} parent=31 // pred_check_branch
        %180 = sbr.rel (%p178) target = $region36
      $region35: #{basic_block_forward.1} parent=31 // pred_region
        %s181 = smul.u32 2, %s11
        %p182 = scmp.lt.s32.totalorder %s181, 3
        %s183 = scalar_select %p182, %s181, 3
        %s184 = smul.addr %s183, 2
        %s185 = smul.addr %s184, 8
        %s186 = scalar_lea.vmem %s0, %s185
        %s187 = smul.u32 2, %s11
      $region36: #{basic_block_forward.1} parent=31 // pred_fallthru
        _
    $region32: #{basic_block_forward.1} parent=5 // pred_fallthru
      _
    %p188 = scmp.le.s32.totalorder 1, %s11
    %p189 = scmp.lt.s32.totalorder %s11, 3
    %p190 = pnand %p188, %p189
    %p191 = pneg %p190
    // Predicated region
    $region37: #{basic_block_forward.1} parent=5 // pred_check
      _
    $region38: #{basic_block_forward.1} parent=5 // pred_check_branch
      %193 = sbr.rel (%p190) target = $region40
    $region39: #{basic_block_forward.1} parent=5 // pred_region
      %s194 = ssub.s32 %s11, 1
      %s195 = smul.u32 2, %s16
      %p196 = scmp.lt.s32.totalorder %s195, 3
      %s197 = scalar_select %p196, %s195, 3
      %s198 = smul.addr %s197, 2
      %s199 = smul.addr %s198, 8
      %s200 = scalar_lea.vmem %s0, %s199
      %p201 = pneg %p37
      %p202 = pneg %p34
      %p203 = pneg %p58
      %p204 = pneg %p55
      %p205 = pneg %p79
      %p206 = pneg %p76
      %p207 = pneg %p100
      %p208 = pneg %p97
      %p209 = pneg %p121
      %p210 = pneg %p118
      %p211 = pneg %p147
      %p212 = pneg %p144
      %s213 = smul.u32 2, %s16
      %p214 = scmp.lt.s32.totalorder %s213, 3
      %s215 = scalar_select %p214, %s213, 3
      %s216 = smul.addr %s215, 2
      %s217 = smul.addr %s216, 8
      %s218 = scalar_lea.vmem %s5, %s217
      %s219 = smul.u32 2, %s16
      %p220 = scmp.lt.s32.totalorder %s219, 3
      %s221 = scalar_select %p220, %s219, 3
      %s222 = smul.addr %s221, 2
      %s223 = smul.addr %s222, 8
      %s224 = scalar_lea.vmem %s0, %s223
      %s225 = smul.u32 2, %s16
      %s226 = smul.u32 2, %s16
      %p227 = scmp.lt.s32.totalorder %s226, 3
      %s228 = scalar_select %p227, %s226, 3
      %s229 = smul.addr %s228, 2
      %s230 = smul.addr %s229, 8
      %s231 = scalar_lea.vmem %s5, %s230
      %s232 = smul.u32 2, %s16
      %234 = vst [vmem:[#allocation2] sm:$0x1] 0.0
      %235 = vst [vmem:[#allocation2 + $0x18] sm:$0x1] 0.0
      %236 = vst [vmem:[#allocation2 + $0x11] sm:$0x1] 0.0
      %237 = vst [vmem:[#allocation2 + $0x29] sm:$0x1] 0.0
      %v238 = vld [vmem:[%s224] sm:$0xff]
      %v239 = vld [vmem:[%s224 + $0x8] sm:$0xff]
      %v240 = vld [vmem:[%s224 + $0x10] sm:$0xff]
      %v241 = vld [vmem:[%s224 + $0x18] sm:$0xff]
      %242 = vst [vmem:[#allocation2 + $0x1] sm:$0xff] %v238
      %243 = vst [vmem:[#allocation2 + $0x9] sm:$0xff] %v239
      %244 = vst [vmem:[#allocation2 + $0x19] sm:$0xff] %v240
      %245 = vst [vmem:[#allocation2 + $0x21] sm:$0xff] %v241
      %v246 = vld [vmem:[#allocation2] sm:$0xff]
      %v247 = vld [vmem:[#allocation2 + $0x8] sm:$0xff]
      %v248 = vld [vmem:[#allocation2 + $0x18] sm:$0xff]
      %v249 = vld [vmem:[#allocation2 + $0x20] sm:$0xff]
      %v250 = vpack.c.bf16 %v247, %v246
      %v251 = vpack.c.bf16 %v249, %v248
      %v252 = vld [vmem:[#allocation2 + $0x1] sm:$0xff]
      %v253 = vld [vmem:[#allocation2 + $0x9] sm:$0xff]
      %v254 = vld [vmem:[#allocation2 + $0x19] sm:$0xff]
      %v255 = vld [vmem:[#allocation2 + $0x21] sm:$0xff]
      %v256 = vpack.c.bf16 %v253, %v252
      %v257 = vpack.c.bf16 %v255, %v254
      %v258 = vld [vmem:[#allocation2 + $0x2] sm:$0xff]
      %v259 = vld [vmem:[#allocation2 + $0xa] sm:$0xff]
      %v260 = vld [vmem:[#allocation2 + $0x1a] sm:$0xff]
      %v261 = vld [vmem:[#allocation2 + $0x22] sm:$0xff]
      %v262 = vpack.c.bf16 %v259, %v258
      %v263 = vpack.c.bf16 %v261, %v260
      %v264 = vld [vmem:[%s1] sm:$0xf]
      %v265 = vld [vmem:[%s1 + $0x4] sm:$0xf]
      %v266 = vld [vmem:[%s1 + $0x8] sm:$0xf]
      %v267 = vld [vmem:[%s1 + $0xc] sm:$0xf]
      %v268 = vld [vmem:[%s1 + $0x10] sm:$0xf]
      %v269 = vld [vmem:[%s1 + $0x14] sm:$0xf]
      %v270 = vld [vmem:[%s1 + $0x18] sm:$0xf]
      %v271 = vld [vmem:[%s1 + $0x1c] sm:$0xf]
      %v272 = vld [vmem:[%s1 + $0x20] sm:$0xf]
      %v273 = vld [vmem:[%s1 + $0x24] sm:$0xf]
      %v274 = vld [vmem:[%s1 + $0x28] sm:$0xf]
      %v275 = vld [vmem:[%s1 + $0x2c] sm:$0xf]
      %v276 = vld [vmem:[%s1 + $0x30] sm:$0xf]
      %v277 = vld [vmem:[%s1 + $0x34] sm:$0xf]
      %v278 = vld [vmem:[%s1 + $0x38] sm:$0xf]
      %v279 = vld [vmem:[%s1 + $0x3c] sm:$0xf]
      %v280 = vld [vmem:[%s1 + $0x40] sm:$0xf]
      %v281 = vld [vmem:[%s1 + $0x44] sm:$0xf]
      %v282 = vld [vmem:[%s1 + $0x48] sm:$0xf]
      %v283 = vld [vmem:[%s1 + $0x4c] sm:$0xf]
      %v284 = vld [vmem:[%s1 + $0x50] sm:$0xf]
      %v285 = vld [vmem:[%s1 + $0x54] sm:$0xf]
      %v286 = vld [vmem:[%s1 + $0x58] sm:$0xf]
      %v287 = vld [vmem:[%s1 + $0x5c] sm:$0xf]
      %v288 = vld [vmem:[%s1 + $0x60] sm:$0xf]
      %v289 = vld [vmem:[%s1 + $0x64] sm:$0xf]
      %v290 = vld [vmem:[%s1 + $0x68] sm:$0xf]
      %v291 = vld [vmem:[%s1 + $0x6c] sm:$0xf]
      %v292 = vld [vmem:[%s1 + $0x70] sm:$0xf]
      %v293 = vld [vmem:[%s1 + $0x74] sm:$0xf]
      %v294 = vld [vmem:[%s1 + $0x78] sm:$0xf]
      %v295 = vld [vmem:[%s1 + $0x7c] sm:$0xf]
      %v296 = vld [vmem:[%s1 + $0x80] sm:$0xf]
      %v297 = vld [vmem:[%s1 + $0x84] sm:$0xf]
      %v298 = vld [vmem:[%s1 + $0x88] sm:$0xf]
      %v299 = vld [vmem:[%s1 + $0x8c] sm:$0xf]
      %v300 = vld [vmem:[%s1 + $0x90] sm:$0xf]
      %v301 = vld [vmem:[%s1 + $0x94] sm:$0xf]
      %v302 = vld [vmem:[%s1 + $0x98] sm:$0xf]
      %v303 = vld [vmem:[%s1 + $0x9c] sm:$0xf]
      %v304 = vld [vmem:[%s1 + $0xa0] sm:$0xf]
      %v305 = vld [vmem:[%s1 + $0xa4] sm:$0xf]
      %v306 = vld [vmem:[%s1 + $0xa8] sm:$0xf]
      %v307 = vld [vmem:[%s1 + $0xac] sm:$0xf]
      %v308 = vld [vmem:[%s1 + $0xb0] sm:$0xf]
      %v309 = vld [vmem:[%s1 + $0xb4] sm:$0xf]
      %v310 = vld [vmem:[%s1 + $0xb8] sm:$0xf]
      %v311 = vld [vmem:[%s1 + $0xbc] sm:$0xf]
      %v360 = vunpack.c.l.b16 %v264
      %v361 = vunpack.c.l.b16 %v265
      %v362 = vunpack.c.l.b16 %v266
      %v363 = vunpack.c.l.b16 %v267
      %v364 = vunpack.c.l.b16 %v268
      %v365 = vunpack.c.l.b16 %v269
      %v366 = vunpack.c.l.b16 %v270
      %v367 = vunpack.c.l.b16 %v271
      %v368 = vunpack.c.l.b16 %v272
      %v369 = vunpack.c.l.b16 %v273
      %v370 = vunpack.c.l.b16 %v274
      %v371 = vunpack.c.l.b16 %v275
      %v372 = vunpack.c.l.b16 %v276
      %v373 = vunpack.c.l.b16 %v277
      %v374 = vunpack.c.l.b16 %v278
      %v375 = vunpack.c.l.b16 %v279
      %v376 = vunpack.c.l.b16 %v280
      %v377 = vunpack.c.l.b16 %v281
      %v378 = vunpack.c.l.b16 %v282
      %v379 = vunpack.c.l.b16 %v283
      %v380 = vunpack.c.l.b16 %v284
      %v381 = vunpack.c.l.b16 %v285
      %v382 = vunpack.c.l.b16 %v286
      %v383 = vunpack.c.l.b16 %v287
      %v384 = vunpack.c.l.b16 %v288
      %v385 = vunpack.c.l.b16 %v289
      %v386 = vunpack.c.l.b16 %v290
      %v387 = vunpack.c.l.b16 %v291
      %v388 = vunpack.c.l.b16 %v292
      %v389 = vunpack.c.l.b16 %v293
      %v390 = vunpack.c.l.b16 %v294
      %v391 = vunpack.c.l.b16 %v295
      %v392 = vunpack.c.l.b16 %v296
      %v393 = vunpack.c.l.b16 %v297
      %v394 = vunpack.c.l.b16 %v298
      %v395 = vunpack.c.l.b16 %v299
      %v396 = vunpack.c.l.b16 %v300
      %v397 = vunpack.c.l.b16 %v301
      %v398 = vunpack.c.l.b16 %v302
      %v399 = vunpack.c.l.b16 %v303
      %v400 = vunpack.c.l.b16 %v304
      %v401 = vunpack.c.l.b16 %v305
      %v402 = vunpack.c.l.b16 %v306
      %v403 = vunpack.c.l.b16 %v307
      %v404 = vunpack.c.l.b16 %v308
      %v405 = vunpack.c.l.b16 %v309
      %v406 = vunpack.c.l.b16 %v310
      %v407 = vunpack.c.l.b16 %v311
      %v408 = vpack.c.b16 %v361, %v360
      %v409 = vpack.c.b16 %v363, %v362
      %v410 = vpack.c.b16 %v365, %v364
      %v411 = vpack.c.b16 %v367, %v366
      %v412 = vpack.c.b16 %v369, %v368
      %v413 = vpack.c.b16 %v371, %v370
      %v414 = vpack.c.b16 %v373, %v372
      %v415 = vpack.c.b16 %v375, %v374
      %v416 = vpack.c.b16 %v377, %v376
      %v417 = vpack.c.b16 %v379, %v378
      %v418 = vpack.c.b16 %v381, %v380
      %v419 = vpack.c.b16 %v383, %v382
      %v420 = vpack.c.b16 %v385, %v384
      %v421 = vpack.c.b16 %v387, %v386
      %v422 = vpack.c.b16 %v389, %v388
      %v423 = vpack.c.b16 %v391, %v390
      %v424 = vpack.c.b16 %v393, %v392
      %v425 = vpack.c.b16 %v395, %v394
      %v426 = vpack.c.b16 %v397, %v396
      %v427 = vpack.c.b16 %v399, %v398
      %v428 = vpack.c.b16 %v401, %v400
      %v429 = vpack.c.b16 %v403, %v402
      %v430 = vpack.c.b16 %v405, %v404
      %v431 = vpack.c.b16 %v407, %v406
      %456 = vmatprep.subr.bf16.mxu0 0
      %457 = vmatpush1.bf16.msra.mxu0 %v415
      %458 = vmatprep.subr.bf16.mxu0 0
      %459 = vmatpush1.bf16.msra.mxu0 %v414
      %460 = vmatprep.subr.bf16.mxu0 0
      %461 = vmatpush1.bf16.msra.mxu0 %v413
      %462 = vmatprep.subr.bf16.mxu0 0
      %463 = vmatpush1.bf16.msra.mxu0 %v412
      %464 = vmatprep.subr.bf16.mxu0 0
      %465 = vmatpush1.bf16.msra.mxu0 %v411
      %466 = vmatprep.subr.bf16.mxu0 0
      %467 = vmatpush1.bf16.msra.mxu0 %v410
      %468 = vmatprep.subr.bf16.mxu0 0
      %469 = vmatpush1.bf16.msra.mxu0 %v409
      %470 = vmatprep.subr.bf16.mxu0 0
      %471 = vmatpush1.bf16.msra.mxu0 %v408
      %472 = vmatprep.subr.bf16.mxu0 0
      %473 = vmatpush2.bf16.msra.mxu0 %v423
      %474 = vmatprep.subr.bf16.mxu0 0
      %475 = vmatpush2.bf16.msra.mxu0 %v422
      %476 = vmatprep.subr.bf16.mxu0 0
      %477 = vmatpush2.bf16.msra.mxu0 %v421
      %478 = vmatprep.subr.bf16.mxu0 0
      %479 = vmatpush2.bf16.msra.mxu0 %v420
      %480 = vmatprep.subr.bf16.mxu0 0
      %481 = vmatpush2.bf16.msra.mxu0 %v419
      %482 = vmatprep.subr.bf16.mxu0 0
      %483 = vmatpush2.bf16.msra.mxu0 %v418
      %484 = vmatprep.subr.bf16.mxu0 0
      %485 = vmatpush2.bf16.msra.mxu0 %v417
      %486 = vmatprep.subr.bf16.mxu0 0
      %487 = vmatpush2.bf16.msra.mxu0 %v416
      %488 = vmatprep.mubr.bf16.mxu0 %v256
      %489 = vmatmul.mubr.bf16.gmra.mxu0 %v250
      %v490 = vpop.f32.mrf.mxu0
      %v491 = vadd.f32 0.0, %v490
      %v492 = vpop.f32.mrf.mxu0
      %v493 = vpop.f32.mrf.mxu0
      %v494 = vadd.f32 0.0, %v493
      %v495 = vpop.f32.mrf.mxu0
      %496 = vmatprep.mubr.bf16.mxu0 %v257
      %497 = vmatmul.mubr.bf16.gmra.mxu0 %v251
      %v498 = vpop.f32.mrf.mxu0
      %v499 = vadd.f32 0.0, %v498
      %v500 = vpop.f32.mrf.mxu0
      %v501 = vpop.f32.mrf.mxu0
      %v502 = vadd.f32 0.0, %v501
      %v503 = vpop.f32.mrf.mxu0
      %504 = vdwg.mxu0
      %505 = vmatprep.subr.bf16.mxu0 0
      %506 = vmatpush1.bf16.msra.mxu0 %v431
      %507 = vmatprep.subr.bf16.mxu0 0
      %508 = vmatpush1.bf16.msra.mxu0 %v430
      %509 = vmatprep.subr.bf16.mxu0 0
      %510 = vmatpush1.bf16.msra.mxu0 %v429
      %511 = vmatprep.subr.bf16.mxu0 0
      %512 = vmatpush1.bf16.msra.mxu0 %v428
      %513 = vmatprep.subr.bf16.mxu0 0
      %514 = vmatpush1.bf16.msra.mxu0 %v427
      %515 = vmatprep.subr.bf16.mxu0 0
      %516 = vmatpush1.bf16.msra.mxu0 %v426
      %517 = vmatprep.subr.bf16.mxu0 0
      %518 = vmatpush1.bf16.msra.mxu0 %v425
      %519 = vmatprep.subr.bf16.mxu0 0
      %520 = vmatpush1.bf16.msra.mxu0 %v424
      %521 = vmatprep.subr.bf16.mxu0 0
      %522 = vmatpush2.bf16.msra.mxu0 0
      %523 = vmatprep.subr.bf16.mxu0 0
      %524 = vmatpush2.bf16.msra.mxu0 0
      %525 = vmatprep.subr.bf16.mxu0 0
      %526 = vmatpush2.bf16.msra.mxu0 0
      %527 = vmatprep.subr.bf16.mxu0 0
      %528 = vmatpush2.bf16.msra.mxu0 0
      %529 = vmatprep.subr.bf16.mxu0 0
      %530 = vmatpush2.bf16.msra.mxu0 0
      %531 = vmatprep.subr.bf16.mxu0 0
      %532 = vmatpush2.bf16.msra.mxu0 0
      %533 = vmatprep.subr.bf16.mxu0 0
      %534 = vmatpush2.bf16.msra.mxu0 0
      %535 = vmatprep.subr.bf16.mxu0 0
      %536 = vmatpush2.bf16.msra.mxu0 0
      %537 = vmatprep.mubr.bf16.mxu0 0
      %538 = vmatmul.mubr.bf16.gmra.mxu0 %v262
      %v539 = vpop.f32.mrf.mxu0
      %v540 = vadd.f32 %v491, %v539
      %v541 = vpop.f32.mrf.mxu0
      %v542 = vpop.f32.mrf.mxu0
      %v543 = vadd.f32 %v494, %v542
      %v544 = vpop.f32.mrf.mxu0
      %545 = vmatprep.mubr.bf16.mxu0 0
      %546 = vmatmul.mubr.bf16.gmra.mxu0 %v263
      %v547 = vpop.f32.mrf.mxu0
      %v548 = vadd.f32 %v499, %v547
      %v549 = vpop.f32.mrf.mxu0
      %v550 = vpop.f32.mrf.mxu0
      %v551 = vadd.f32 %v502, %v550
      %v552 = vpop.f32.mrf.mxu0
      %553 = vdwg.mxu0
      %v554 = vld [vmem:[%s2] sm:$0x1]
      %v556 = vlaneseq
      %v557 = vshrl.u32 %v556, 7
      %v558 = vsub.s32 0, %v557
      %v559 = vrot.slane %v554, %v558
      %v561 = vadd.f32 %v540, %v559
      %v562 = vadd.f32 %v543, %v559
      %v563 = vadd.f32 %v548, %v559
      %v564 = vadd.f32 %v551, %v559
      %v565 = vmul.f32 %v561, 0.2
      %v566 = vmul.f32 %v562, 0.2
      %v567 = vmul.f32 %v563, 0.2
      %v568 = vmul.f32 %v564, 0.2
      %v569 = vmax.f32 %v561, %v565
      %v570 = vmax.f32 %v562, %v566
      %v571 = vmax.f32 %v563, %v567
      %v572 = vmax.f32 %v564, %v568
      %573 = vst [vmem:[#allocation2 + $0x1] sm:$0xff] %v569
      %574 = vst [vmem:[#allocation2 + $0x9] sm:$0xff] %v570
      %575 = vst [vmem:[#allocation2 + $0x19] sm:$0xff] %v571
      %576 = vst [vmem:[#allocation2 + $0x21] sm:$0xff] %v572
      %v577 = vld [vmem:[#allocation2] sm:$0xff]
      %v578 = vld [vmem:[#allocation2 + $0x8] sm:$0xff]
      %v579 = vld [vmem:[#allocation2 + $0x18] sm:$0xff]
      %v580 = vld [vmem:[#allocation2 + $0x20] sm:$0xff]
      %v581 = vpack.c.bf16 %v578, %v577
      %v582 = vpack.c.bf16 %v580, %v579
      %v583 = vld [vmem:[#allocation2 + $0x1] sm:$0xff]
      %v584 = vld [vmem:[#allocation2 + $0x9] sm:$0xff]
      %v585 = vld [vmem:[#allocation2 + $0x19] sm:$0xff]
      %v586 = vld [vmem:[#allocation2 + $0x21] sm:$0xff]
      %v587 = vpack.c.bf16 %v584, %v583
      %v588 = vpack.c.bf16 %v586, %v585
      %v589 = vld [vmem:[#allocation2 + $0x2] sm:$0xff]
      %v590 = vld [vmem:[#allocation2 + $0xa] sm:$0xff]
      %v591 = vld [vmem:[#allocation2 + $0x1a] sm:$0xff]
      %v592 = vld [vmem:[#allocation2 + $0x22] sm:$0xff]
      %v593 = vpack.c.bf16 %v590, %v589
      %v594 = vpack.c.bf16 %v592, %v591
      %v595 = vld [vmem:[%s3] sm:$0xf]
      %v596 = vld [vmem:[%s3 + $0x4] sm:$0xf]
      %v597 = vld [vmem:[%s3 + $0x8] sm:$0xf]
      %v598 = vld [vmem:[%s3 + $0xc] sm:$0xf]
      %v599 = vld [vmem:[%s3 + $0x10] sm:$0xf]
      %v600 = vld [vmem:[%s3 + $0x14] sm:$0xf]
      %v601 = vld [vmem:[%s3 + $0x18] sm:$0xf]
      %v602 = vld [vmem:[%s3 + $0x1c] sm:$0xf]
      %v603 = vld [vmem:[%s3 + $0x20] sm:$0xf]
      %v604 = vld [vmem:[%s3 + $0x24] sm:$0xf]
      %v605 = vld [vmem:[%s3 + $0x28] sm:$0xf]
      %v606 = vld [vmem:[%s3 + $0x2c] sm:$0xf]
      %v607 = vld [vmem:[%s3 + $0x30] sm:$0xf]
      %v608 = vld [vmem:[%s3 + $0x34] sm:$0xf]
      %v609 = vld [vmem:[%s3 + $0x38] sm:$0xf]
      %v610 = vld [vmem:[%s3 + $0x3c] sm:$0xf]
      %v611 = vld [vmem:[%s3 + $0x40] sm:$0xf]
      %v612 = vld [vmem:[%s3 + $0x44] sm:$0xf]
      %v613 = vld [vmem:[%s3 + $0x48] sm:$0xf]
      %v614 = vld [vmem:[%s3 + $0x4c] sm:$0xf]
      %v615 = vld [vmem:[%s3 + $0x50] sm:$0xf]
      %v616 = vld [vmem:[%s3 + $0x54] sm:$0xf]
      %v617 = vld [vmem:[%s3 + $0x58] sm:$0xf]
      %v618 = vld [vmem:[%s3 + $0x5c] sm:$0xf]
      %v619 = vld [vmem:[%s3 + $0x60] sm:$0xf]
      %v620 = vld [vmem:[%s3 + $0x64] sm:$0xf]
      %v621 = vld [vmem:[%s3 + $0x68] sm:$0xf]
      %v622 = vld [vmem:[%s3 + $0x6c] sm:$0xf]
      %v623 = vld [vmem:[%s3 + $0x70] sm:$0xf]
      %v624 = vld [vmem:[%s3 + $0x74] sm:$0xf]
      %v625 = vld [vmem:[%s3 + $0x78] sm:$0xf]
      %v626 = vld [vmem:[%s3 + $0x7c] sm:$0xf]
      %v627 = vld [vmem:[%s3 + $0x80] sm:$0xf]
      %v628 = vld [vmem:[%s3 + $0x84] sm:$0xf]
      %v629 = vld [vmem:[%s3 + $0x88] sm:$0xf]
      %v630 = vld [vmem:[%s3 + $0x8c] sm:$0xf]
      %v631 = vld [vmem:[%s3 + $0x90] sm:$0xf]
      %v632 = vld [vmem:[%s3 + $0x94] sm:$0xf]
      %v633 = vld [vmem:[%s3 + $0x98] sm:$0xf]
      %v634 = vld [vmem:[%s3 + $0x9c] sm:$0xf]
      %v635 = vld [vmem:[%s3 + $0xa0] sm:$0xf]
      %v636 = vld [vmem:[%s3 + $0xa4] sm:$0xf]
      %v637 = vld [vmem:[%s3 + $0xa8] sm:$0xf]
      %v638 = vld [vmem:[%s3 + $0xac] sm:$0xf]
      %v639 = vld [vmem:[%s3 + $0xb0] sm:$0xf]
      %v640 = vld [vmem:[%s3 + $0xb4] sm:$0xf]
      %v641 = vld [vmem:[%s3 + $0xb8] sm:$0xf]
      %v642 = vld [vmem:[%s3 + $0xbc] sm:$0xf]
      %v691 = vunpack.c.l.b16 %v595
      %v692 = vunpack.c.l.b16 %v596
      %v693 = vunpack.c.l.b16 %v597
      %v694 = vunpack.c.l.b16 %v598
      %v695 = vunpack.c.l.b16 %v599
      %v696 = vunpack.c.l.b16 %v600
      %v697 = vunpack.c.l.b16 %v601
      %v698 = vunpack.c.l.b16 %v602
      %v699 = vunpack.c.l.b16 %v603
      %v700 = vunpack.c.l.b16 %v604
      %v701 = vunpack.c.l.b16 %v605
      %v702 = vunpack.c.l.b16 %v606
      %v703 = vunpack.c.l.b16 %v607
      %v704 = vunpack.c.l.b16 %v608
      %v705 = vunpack.c.l.b16 %v609
      %v706 = vunpack.c.l.b16 %v610
      %v707 = vunpack.c.l.b16 %v611
      %v708 = vunpack.c.l.b16 %v612
      %v709 = vunpack.c.l.b16 %v613
      %v710 = vunpack.c.l.b16 %v614
      %v711 = vunpack.c.l.b16 %v615
      %v712 = vunpack.c.l.b16 %v616
      %v713 = vunpack.c.l.b16 %v617
      %v714 = vunpack.c.l.b16 %v618
      %v715 = vunpack.c.l.b16 %v619
      %v716 = vunpack.c.l.b16 %v620
      %v717 = vunpack.c.l.b16 %v621
      %v718 = vunpack.c.l.b16 %v622
      %v719 = vunpack.c.l.b16 %v623
      %v720 = vunpack.c.l.b16 %v624
      %v721 = vunpack.c.l.b16 %v625
      %v722 = vunpack.c.l.b16 %v626
      %v723 = vunpack.c.l.b16 %v627
      %v724 = vunpack.c.l.b16 %v628
      %v725 = vunpack.c.l.b16 %v629
      %v726 = vunpack.c.l.b16 %v630
      %v727 = vunpack.c.l.b16 %v631
      %v728 = vunpack.c.l.b16 %v632
      %v729 = vunpack.c.l.b16 %v633
      %v730 = vunpack.c.l.b16 %v634
      %v731 = vunpack.c.l.b16 %v635
      %v732 = vunpack.c.l.b16 %v636
      %v733 = vunpack.c.l.b16 %v637
      %v734 = vunpack.c.l.b16 %v638
      %v735 = vunpack.c.l.b16 %v639
      %v736 = vunpack.c.l.b16 %v640
      %v737 = vunpack.c.l.b16 %v641
      %v738 = vunpack.c.l.b16 %v642
      %v739 = vpack.c.b16 %v692, %v691
      %v740 = vpack.c.b16 %v694, %v693
      %v741 = vpack.c.b16 %v696, %v695
      %v742 = vpack.c.b16 %v698, %v697
      %v743 = vpack.c.b16 %v700, %v699
      %v744 = vpack.c.b16 %v702, %v701
      %v745 = vpack.c.b16 %v704, %v703
      %v746 = vpack.c.b16 %v706, %v705
      %v747 = vpack.c.b16 %v708, %v707
      %v748 = vpack.c.b16 %v710, %v709
      %v749 = vpack.c.b16 %v712, %v711
      %v750 = vpack.c.b16 %v714, %v713
      %v751 = vpack.c.b16 %v716, %v715
      %v752 = vpack.c.b16 %v718, %v717
      %v753 = vpack.c.b16 %v720, %v719
      %v754 = vpack.c.b16 %v722, %v721
      %v755 = vpack.c.b16 %v724, %v723
      %v756 = vpack.c.b16 %v726, %v725
      %v757 = vpack.c.b16 %v728, %v727
      %v758 = vpack.c.b16 %v730, %v729
      %v759 = vpack.c.b16 %v732, %v731
      %v760 = vpack.c.b16 %v734, %v733
      %v761 = vpack.c.b16 %v736, %v735
      %v762 = vpack.c.b16 %v738, %v737
      %787 = vmatprep.subr.bf16.mxu0 0
      %788 = vmatpush1.bf16.msra.mxu0 %v746
      %789 = vmatprep.subr.bf16.mxu0 0
      %790 = vmatpush1.bf16.msra.mxu0 %v745
      %791 = vmatprep.subr.bf16.mxu0 0
      %792 = vmatpush1.bf16.msra.mxu0 %v744
      %793 = vmatprep.subr.bf16.mxu0 0
      %794 = vmatpush1.bf16.msra.mxu0 %v743
      %795 = vmatprep.subr.bf16.mxu0 0
      %796 = vmatpush1.bf16.msra.mxu0 %v742
      %797 = vmatprep.subr.bf16.mxu0 0
      %798 = vmatpush1.bf16.msra.mxu0 %v741
      %799 = vmatprep.subr.bf16.mxu0 0
      %800 = vmatpush1.bf16.msra.mxu0 %v740
      %801 = vmatprep.subr.bf16.mxu0 0
      %802 = vmatpush1.bf16.msra.mxu0 %v739
      %803 = vmatprep.subr.bf16.mxu0 0
      %804 = vmatpush2.bf16.msra.mxu0 %v754
      %805 = vmatprep.subr.bf16.mxu0 0
      %806 = vmatpush2.bf16.msra.mxu0 %v753
      %807 = vmatprep.subr.bf16.mxu0 0
      %808 = vmatpush2.bf16.msra.mxu0 %v752
      %809 = vmatprep.subr.bf16.mxu0 0
      %810 = vmatpush2.bf16.msra.mxu0 %v751
      %811 = vmatprep.subr.bf16.mxu0 0
      %812 = vmatpush2.bf16.msra.mxu0 %v750
      %813 = vmatprep.subr.bf16.mxu0 0
      %814 = vmatpush2.bf16.msra.mxu0 %v749
      %815 = vmatprep.subr.bf16.mxu0 0
      %816 = vmatpush2.bf16.msra.mxu0 %v748
      %817 = vmatprep.subr.bf16.mxu0 0
      %818 = vmatpush2.bf16.msra.mxu0 %v747
      %819 = vmatprep.mubr.bf16.mxu0 %v587
      %820 = vmatmul.mubr.bf16.gmra.mxu0 %v581
      %v821 = vpop.f32.mrf.mxu0
      %v822 = vadd.f32 0.0, %v821
      %v823 = vpop.f32.mrf.mxu0
      %v824 = vpop.f32.mrf.mxu0
      %v825 = vadd.f32 0.0, %v824
      %v826 = vpop.f32.mrf.mxu0
      %827 = vmatprep.mubr.bf16.mxu0 %v588
      %828 = vmatmul.mubr.bf16.gmra.mxu0 %v582
      %v829 = vpop.f32.mrf.mxu0
      %v830 = vadd.f32 0.0, %v829
      %v831 = vpop.f32.mrf.mxu0
      %v832 = vpop.f32.mrf.mxu0
      %v833 = vadd.f32 0.0, %v832
      %v834 = vpop.f32.mrf.mxu0
      %835 = vdwg.mxu0
      %836 = vmatprep.subr.bf16.mxu0 0
      %837 = vmatpush1.bf16.msra.mxu0 %v762
      %838 = vmatprep.subr.bf16.mxu0 0
      %839 = vmatpush1.bf16.msra.mxu0 %v761
      %840 = vmatprep.subr.bf16.mxu0 0
      %841 = vmatpush1.bf16.msra.mxu0 %v760
      %842 = vmatprep.subr.bf16.mxu0 0
      %843 = vmatpush1.bf16.msra.mxu0 %v759
      %844 = vmatprep.subr.bf16.mxu0 0
      %845 = vmatpush1.bf16.msra.mxu0 %v758
      %846 = vmatprep.subr.bf16.mxu0 0
      %847 = vmatpush1.bf16.msra.mxu0 %v757
      %848 = vmatprep.subr.bf16.mxu0 0
      %849 = vmatpush1.bf16.msra.mxu0 %v756
      %850 = vmatprep.subr.bf16.mxu0 0
      %851 = vmatpush1.bf16.msra.mxu0 %v755
      %852 = vmatprep.subr.bf16.mxu0 0
      %853 = vmatpush2.bf16.msra.mxu0 0
      %854 = vmatprep.subr.bf16.mxu0 0
      %855 = vmatpush2.bf16.msra.mxu0 0
      %856 = vmatprep.subr.bf16.mxu0 0
      %857 = vmatpush2.bf16.msra.mxu0 0
      %858 = vmatprep.subr.bf16.mxu0 0
      %859 = vmatpush2.bf16.msra.mxu0 0
      %860 = vmatprep.subr.bf16.mxu0 0
      %861 = vmatpush2.bf16.msra.mxu0 0
      %862 = vmatprep.subr.bf16.mxu0 0
      %863 = vmatpush2.bf16.msra.mxu0 0
      %864 = vmatprep.subr.bf16.mxu0 0
      %865 = vmatpush2.bf16.msra.mxu0 0
      %866 = vmatprep.subr.bf16.mxu0 0
      %867 = vmatpush2.bf16.msra.mxu0 0
      %868 = vmatprep.mubr.bf16.mxu0 0
      %869 = vmatmul.mubr.bf16.gmra.mxu0 %v593
      %v870 = vpop.f32.mrf.mxu0
      %v871 = vadd.f32 %v822, %v870
      %v872 = vpop.f32.mrf.mxu0
      %v873 = vpop.f32.mrf.mxu0
      %v874 = vadd.f32 %v825, %v873
      %v875 = vpop.f32.mrf.mxu0
      %876 = vmatprep.mubr.bf16.mxu0 0
      %877 = vmatmul.mubr.bf16.gmra.mxu0 %v594
      %v878 = vpop.f32.mrf.mxu0
      %v879 = vadd.f32 %v830, %v878
      %v880 = vpop.f32.mrf.mxu0
      %v881 = vpop.f32.mrf.mxu0
      %v882 = vadd.f32 %v833, %v881
      %v883 = vpop.f32.mrf.mxu0
      %884 = vdwg.mxu0
      %v885 = vld [vmem:[%s4] sm:$0x1]
      %v887 = vlaneseq
      %v888 = vshrl.u32 %v887, 7
      %v889 = vsub.s32 0, %v888
      %v890 = vrot.slane %v885, %v889
      %v892 = vadd.f32 %v871, %v890
      %v893 = vadd.f32 %v874, %v890
      %v894 = vadd.f32 %v879, %v890
      %v895 = vadd.f32 %v882, %v890
      %v896 = vadd.f32 %v892, %v238
      %v897 = vadd.f32 %v893, %v239
      %v898 = vadd.f32 %v894, %v240
      %v899 = vadd.f32 %v895, %v241
      %v900 = vmul.f32 %v896, 0.2
      %v901 = vmul.f32 %v897, 0.2
      %v902 = vmul.f32 %v898, 0.2
      %v903 = vmul.f32 %v899, 0.2
      %v904 = vmax.f32 %v896, %v900
      %v905 = vmax.f32 %v897, %v901
      %v906 = vmax.f32 %v898, %v902
      %v907 = vmax.f32 %v899, %v903
      %908 = vst [vmem:[%s231] sm:$0xff] %v904
      %909 = vst [vmem:[%s231 + $0x8] sm:$0xff] %v905
      %910 = vst [vmem:[%s231 + $0x10] sm:$0xff] %v906
      %911 = vst [vmem:[%s231 + $0x18] sm:$0xff] %v907
      %s912 = smul.u32 2, %s16
      %p913 = scmp.lt.s32.totalorder %s912, 3
      %s914 = scalar_select %p913, %s912, 3
      %s915 = smul.addr %s914, 2
      %s916 = smul.addr %s915, 8
      %s917 = scalar_lea.vmem %s5, %s916
      // Predicated region
      $region41: #{basic_block_forward.1} parent=39 // pred_check
        %p918 = pneg %p144
      $region42: #{basic_block_forward.1} parent=39 // pred_check_branch
        %920 = sbr.rel (%p918) target = $region44
      $region43: #{basic_block_forward.1} parent=39 // pred_region
        %s921 = smul.u32 2, %s16
      $region44: #{basic_block_forward.1} parent=39 // pred_fallthru
        _
    $region40: #{basic_block_forward.1} parent=5 // pred_fallthru
      _
    %p922 = scmp.le.s32.totalorder 2, %s11
    // Predicated region
    $region45: #{basic_block_forward.1} parent=5 // pred_check
      %p923 = pneg %p922
    $region46: #{basic_block_forward.1} parent=5 // pred_check_branch
      %925 = sbr.rel (%p923) target = $region48
    $region47: #{basic_block_forward.1} parent=5 // pred_region
      %s926 = ssub.s32 %s11, 2
      // Predicated region
      $region49: #{basic_block_forward.1} parent=47 // pred_check
        %p927 = pneg %p150
      $region50: #{basic_block_forward.1} parent=47 // pred_check_branch
        %929 = sbr.rel (%p927) target = $region52
      $region51: #{basic_block_forward.1} parent=47 // pred_region
        %s930 = smul.u32 2, %s17
        %p931 = scmp.lt.s32.totalorder %s930, 3
        %s932 = scalar_select %p931, %s930, 3
        %s933 = smul.addr %s932, 2
        %s934 = smul.addr %s933, 8
        %s935 = scalar_lea.vmem %s5, %s934
      $region52: #{basic_block_forward.1} parent=47 // pred_fallthru
        _
    $region48: #{basic_block_forward.1} parent=5 // pred_fallthru
      _
  $region6: #{basic_block_forward.1} parent=0 // loop_footer
    %s15 = sadd.s32 1, %s11
  $region7: #{basic_block_forward.1} parent=0 // loop_footer_branch
    %10 = sbr.rel target = $region3
  $region8: #{basic_block_forward.1} parent=0 // loop_exit
    _

// kernel: tile.13
$region0: #{tile.13}
  #allocation2 [shape = 's32[1]{0}', space=sflag, size = 0x4, scoped, tag = 'scoped memory for tile.13']
  %s0 = inlined_call_operand.hbm [shape: f32[8], index: 0, kind: input, shape index: {}]
  %s1 = inlined_call_operand.vmem [shape: f32[16,8], index: 1, kind: output, shape index: {}]
  $region1: #{tile.13} parent=0
    #allocation0 [shape = 'u8[512]{0}', space=vmem, size = 0x400, scoped, tag = 'operand span for operand 0']
    #allocation1 [shape = 's32[1]{0}', space=sflag, size = 0x4, scoped, tag = 'scoped memory for tile.13']
    %2 = vsyncpa [#allocation1], 0
    // Predicated region
    $region2: #{tile.13} parent=1 // pred_check
      _
    $region3: #{tile.13} parent=1 // pred_check_branch
      %4 = sbr.rel (0) target = $region5
    $region4: #{tile.13} parent=1 // pred_region
      %s6 = ssub.s32 16, 16
      %7 = vsyncadd [#allocation1], %s6
      %s9 = sshll.u32 [#allocation0], 4
      %s10 = int_to_ptr.vmem [resolvable:$true] %s9
      %12 = dma.hbm_to_vmem [thread:$0]  %s0, 16, %s10, [#allocation1]
    $region5: #{tile.13} parent=1 // pred_fallthru
      _
    // Predicated region
    $region6: #{tile.13} parent=1 // pred_check
      _
    $region7: #{tile.13} parent=1 // pred_check_branch
      %14 = sbr.rel (0) target = $region9
    $region8: #{tile.13} parent=1 // pred_region
      %15 = dma.done [#allocation1], 16
    $region9: #{tile.13} parent=1 // pred_fallthru
      _
    %v16 = vld [vmem:[#allocation0] ss:$0 sm:$0xff]
    %17 = vst [vmem:[%s1] sm:$0xff] %v16
    %s18 = scalar_lea.vmem %s1, 8
    %19 = vst [vmem:[%s18] sm:$0xff] %v16
    %20 = vsyncpa [#allocation1], 1

// kernel: tile.14
$region0: #{tile.14}
  %s0 = inlined_call_operand.vmem [shape: f32[16,8], index: 0, kind: input, shape index: {}]
  %s1 = inlined_call_operand.vmem [shape: f32[1,128], index: 1, kind: output, shape index: {}]
  $region1: #{tile.14} parent=0
    #allocation0 [shape = 'u8[4096]{0}', space=vmem, size = 0x1000, scoped, tag = 'scoped mem for output reshape']
    %v2 = vld [vmem:[%s0] sm:$0x1]
    %vm3 = vcmask 64512
    %4 = vst.msk [vmem:[#allocation0] sm:$0x1] %vm3, %v2
    %s5 = scalar_lea.vmem %s0, 15
    %v6 = vld [vmem:[%s5] sm:$0x1]
    %7 = vrot.lane.b32.xlu0 %v6, 120
    %v8 = vpop.permute.xlu0 %7
    %vm9 = vcmask 1048512
    %10 = vst.msk [vmem:[#allocation0] sm:$0x1] %vm9, %v8
    %s11 = scalar_lea.vmem %s0, 14
    %v12 = vld [vmem:[%s11] sm:$0x1]
    %13 = vrot.lane.b32.xlu0 %v12, 112
    %v14 = vpop.permute.xlu0 %13
    %vm15 = vcmask 982912
    %16 = vst.msk [vmem:[#allocation0] sm:$0x1] %vm15, %v14
    %s17 = scalar_lea.vmem %s0, 13
    %v18 = vld [vmem:[%s17] sm:$0x1]
    %19 = vrot.lane.b32.xlu0 %v18, 104
    %v20 = vpop.permute.xlu0 %19
    %vm21 = vcmask 917312
    %22 = vst.msk [vmem:[#allocation0] sm:$0x1] %vm21, %v20
    %s23 = scalar_lea.vmem %s0, 12
    %v24 = vld [vmem:[%s23] sm:$0x1]
    %25 = vrot.lane.b32.xlu0 %v24, 96
    %v26 = vpop.permute.xlu0 %25
    %vm27 = vcmask 851712
    %28 = vst.msk [vmem:[#allocation0] sm:$0x1] %vm27, %v26
    %s29 = scalar_lea.vmem %s0, 11
    %v30 = vld [vmem:[%s29] sm:$0x1]
    %31 = vrot.lane.b32.xlu0 %v30, 88
    %v32 = vpop.permute.xlu0 %31
    %vm33 = vcmask 786112
    %34 = vst.msk [vmem:[#allocation0] sm:$0x1] %vm33, %v32
    %s35 = scalar_lea.vmem %s0, 10
    %v36 = vld [vmem:[%s35] sm:$0x1]
    %37 = vrot.lane.b32.xlu0 %v36, 80
    %v38 = vpop.permute.xlu0 %37
    %vm39 = vcmask 720512
    %40 = vst.msk [vmem:[#allocation0] sm:$0x1] %vm39, %v38
    %s41 = scalar_lea.vmem %s0, 9
    %v42 = vld [vmem:[%s41] sm:$0x1]
    %43 = vrot.lane.b32.xlu0 %v42, 72
    %v44 = vpop.permute.xlu0 %43
    %vm45 = vcmask 654912
    %46 = vst.msk [vmem:[#allocation0] sm:$0x1] %vm45, %v44
    %s47 = scalar_lea.vmem %s0, 8
    %v48 = vld [vmem:[%s47] sm:$0x1]
    %49 = vrot.lane.b32.xlu0 %v48, 64
    %v50 = vpop.permute.xlu0 %49
    %vm51 = vcmask 589312
    %52 = vst.msk [vmem:[#allocation0] sm:$0x1] %vm51, %v50
    %s53 = scalar_lea.vmem %s0, 7
    %v54 = vld [vmem:[%s53] sm:$0x1]
    %55 = vrot.lane.b32.xlu0 %v54, 56
    %v56 = vpop.permute.xlu0 %55
    %vm57 = vcmask 523712
    %58 = vst.msk [vmem:[#allocation0] sm:$0x1] %vm57, %v56
    %s59 = scalar_lea.vmem %s0, 6
    %v60 = vld [vmem:[%s59] sm:$0x1]
    %61 = vrot.lane.b32.xlu0 %v60, 48
    %v62 = vpop.permute.xlu0 %61
    %vm63 = vcmask 458112
    %64 = vst.msk [vmem:[#allocation0] sm:$0x1] %vm63, %v62
    %s65 = scalar_lea.vmem %s0, 5
    %v66 = vld [vmem:[%s65] sm:$0x1]
    %67 = vrot.lane.b32.xlu0 %v66, 40
    %v68 = vpop.permute.xlu0 %67
    %vm69 = vcmask 392512
    %70 = vst.msk [vmem:[#allocation0] sm:$0x1] %vm69, %v68
    %s71 = scalar_lea.vmem %s0, 4
    %v72 = vld [vmem:[%s71] sm:$0x1]
    %73 = vrot.lane.b32.xlu0 %v72, 32
    %v74 = vpop.permute.xlu0 %73
    %vm75 = vcmask 326912
    %76 = vst.msk [vmem:[#allocation0] sm:$0x1] %vm75, %v74
    %s77 = scalar_lea.vmem %s0, 3
    %v78 = vld [vmem:[%s77] sm:$0x1]
    %79 = vrot.lane.b32.xlu0 %v78, 24
    %v80 = vpop.permute.xlu0 %79
    %vm81 = vcmask 261312
    %82 = vst.msk [vmem:[#allocation0] sm:$0x1] %vm81, %v80
    %s83 = scalar_lea.vmem %s0, 2
    %v84 = vld [vmem:[%s83] sm:$0x1]
    %85 = vrot.lane.b32.xlu0 %v84, 16
    %v86 = vpop.permute.xlu0 %85
    %vm87 = vcmask 195712
    %88 = vst.msk [vmem:[#allocation0] sm:$0x1] %vm87, %v86
    %s89 = scalar_lea.vmem %s0, 1
    %v90 = vld [vmem:[%s89] sm:$0x1]
    %91 = vrot.lane.b32.xlu0 %v90, 8
    %v92 = vpop.permute.xlu0 %91
    %vm93 = vcmask 130112
    %94 = vst.msk [vmem:[#allocation0] sm:$0x1] %vm93, %v92
    %s96 = sshll.u32 1, 1
    %s97 = ssub.s32 %s96, 1
    %v99 = vld [vmem:[#allocation0] sm:%s97]
    %s100 = sshll.u32 1, 1
    %s101 = ssub.s32 %s100, 1
    %102 = vst [vmem:[%s1] sm:%s101] %v99

// kernel: basic_block_forward.1
$region0: #{basic_block_forward.1}
  #allocation0 [shape = 'u32[]', space=smem, size = 0x4, offset = 0x4, fixed_abs, tag = 'smem constant byte address 0x4 - core index']
  #allocation1 [shape = 'u32[144,128]{1,0:T(1,128)}', space=vmem, size = 0x12000, scoped, tag = 'internal scratch']
  #allocation2 [shape = 'f32[2,18,128]{2,1,0:T(8,128)}', space=vmem, size = 0x6000, scoped, tag = 'scratch operand']
  %s0 = inlined_call_operand.vmem [shape: f32[4,16,128], index: 0, kind: input, shape index: {}]
  %s1 = inlined_call_operand.vmem [shape: bf16[384,128], index: 1, kind: input, shape index: {}]
  %s2 = inlined_call_operand.vmem [shape: f32[1,128], index: 2, kind: input, shape index: {}]
  %s3 = inlined_call_operand.vmem [shape: bf16[384,128], index: 3, kind: input, shape index: {}]
  %s4 = inlined_call_operand.vmem [shape: f32[1,128], index: 4, kind: input, shape index: {}]
  %s5 = inlined_call_operand.vmem [shape: f32[4,16,128], index: 5, kind: output, shape index: {}]
  %s6 = sld [smem:[#allocation0]]
  $region53: #{basic_block_forward.1} parent=0
    _
  %s8 = ssub.s32 1, %s6
  %s9 = scalar_select 0, %s8, %s6
  loop: start=0, step=1, limit=4
  $region2: #{basic_block_forward.1} parent=0 // loop_pre_header
    _
  $region3: #{basic_block_forward.1} parent=0 // loop_header
    %s11 = sphi 0, %s15
    %p12 = scmp.ge.s32.totalorder %s11, 4
    %s21 = sphi 0, %s23
    %s24 = sphi 0, %s21
    %s25 = sphi 0, %s24
    %s41 = sphi 0, %s25
    %s45 = sphi 0, %s45
    %s47 = sphi 0, %s45
    %s48 = sphi 0, %s47
    %s62 = sphi 0, %s48
    %s66 = sphi 0, %s66
    %s68 = sphi 0, %s66
    %s69 = sphi 0, %s68
    %s83 = sphi 0, %s69
    %s87 = sphi 0, %s87
    %s89 = sphi 0, %s87
    %s90 = sphi 0, %s89
    %s104 = sphi 0, %s90
    %s108 = sphi 0, %s108
    %s110 = sphi 0, %s108
    %s111 = sphi 0, %s110
    %s125 = sphi 0, %s111
    %s131 = sphi 0, %s133
    %s134 = sphi 0, %s131
    %s135 = sphi 0, %s134
    %s151 = sphi 0, %s135
  $region4: #{basic_block_forward.1} parent=0 // loop_header_branch
    %14 = sbr.rel (%p12) target = $region8
  $region5: #{basic_block_forward.1} parent=0 // loop_body
    %s16 = ssub.s32 %s11, 1
    %s17 = ssub.s32 %s11, 2
    %s18 = sadd.s32 %s11, 1
    %s19 = ssub.s32 %s11, %s18
    %p20 = scmp.eq.s32.totalorder %s19, 0
    %s22 = sadd.s32 %s21, 1
    %s23 = scalar_select %p20, %s21, %s22
    %p26 = pneg %p20
    %p27 = scmp.eq.s32.totalorder %s11, 1
    %p28 = por %p26, %p27
    %p29 = scmp.ne.s32.totalorder %s21, %s24
    %p30 = scmp.eq.s32.totalorder %s11, 0
    %p31 = por %p29, %p30
    %p32 = scmp.ne.s32.totalorder %s21, %s24
    %p33 = scmp.eq.s32.totalorder %s16, 1
    %p34 = por %p32, %p33
    %p35 = scmp.ne.s32.totalorder %s24, %s25
    %p36 = scmp.eq.s32.totalorder %s16, 0
    %p37 = por %p35, %p36
    %p38 = scmp.ne.s32.totalorder %s24, %s25
    %p39 = scmp.eq.s32.totalorder %s17, 1
    %p40 = por %p38, %p39
    %p42 = scmp.ne.s32.totalorder %s25, %s41
    %p43 = scmp.eq.s32.totalorder %s17, 0
    %p44 = por %p42, %p43
    %s46 = sadd.s32 %s45, 1
    %p49 = scmp.eq.s32.totalorder %s11, 1
    %p50 = scmp.ne.s32.totalorder %s45, %s47
    %p51 = scmp.eq.s32.totalorder %s11, 0
    %p52 = por %p50, %p51
    %p53 = scmp.ne.s32.totalorder %s45, %s47
    %p54 = scmp.eq.s32.totalorder %s16, 1
    %p55 = por %p53, %p54
    %p56 = scmp.ne.s32.totalorder %s47, %s48
    %p57 = scmp.eq.s32.totalorder %s16, 0
    %p58 = por %p56, %p57
    %p59 = scmp.ne.s32.totalorder %s47, %s48
    %p60 = scmp.eq.s32.totalorder %s17, 1
    %p61 = por %p59, %p60
    %p63 = scmp.ne.s32.totalorder %s48, %s62
    %p64 = scmp.eq.s32.totalorder %s17, 0
    %p65 = por %p63, %p64
    %s67 = sadd.s32 %s66, 1
    %p70 = scmp.eq.s32.totalorder %s11, 1
    %p71 = scmp.ne.s32.totalorder %s66, %s68
    %p72 = scmp.eq.s32.totalorder %s11, 0
    %p73 = por %p71, %p72
    %p74 = scmp.ne.s32.totalorder %s66, %s68
    %p75 = scmp.eq.s32.totalorder %s16, 1
    %p76 = por %p74, %p75
    %p77 = scmp.ne.s32.totalorder %s68, %s69
    %p78 = scmp.eq.s32.totalorder %s16, 0
    %p79 = por %p77, %p78
    %p80 = scmp.ne.s32.totalorder %s68, %s69
    %p81 = scmp.eq.s32.totalorder %s17, 1
    %p82 = por %p80, %p81
    %p84 = scmp.ne.s32.totalorder %s69, %s83
    %p85 = scmp.eq.s32.totalorder %s17, 0
    %p86 = por %p84, %p85
    %s88 = sadd.s32 %s87, 1
    %p91 = scmp.eq.s32.totalorder %s11, 1
    %p92 = scmp.ne.s32.totalorder %s87, %s89
    %p93 = scmp.eq.s32.totalorder %s11, 0
    %p94 = por %p92, %p93
    %p95 = scmp.ne.s32.totalorder %s87, %s89
    %p96 = scmp.eq.s32.totalorder %s16, 1
    %p97 = por %p95, %p96
    %p98 = scmp.ne.s32.totalorder %s89, %s90
    %p99 = scmp.eq.s32.totalorder %s16, 0
    %p100 = por %p98, %p99
    %p101 = scmp.ne.s32.totalorder %s89, %s90
    %p102 = scmp.eq.s32.totalorder %s17, 1
    %p103 = por %p101, %p102
    %p105 = scmp.ne.s32.totalorder %s90, %s104
    %p106 = scmp.eq.s32.totalorder %s17, 0
    %p107 = por %p105, %p106
    %s109 = sadd.s32 %s108, 1
    %p112 = scmp.eq.s32.totalorder %s11, 1
    %p113 = scmp.ne.s32.totalorder %s108, %s110
    %p114 = scmp.eq.s32.totalorder %s11, 0
    %p115 = por %p113, %p114
    %p116 = scmp.ne.s32.totalorder %s108, %s110
    %p117 = scmp.eq.s32.totalorder %s16, 1
    %p118 = por %p116, %p117
    %p119 = scmp.ne.s32.totalorder %s110, %s111
    %p120 = scmp.eq.s32.totalorder %s16, 0
    %p121 = por %p119, %p120
    %p122 = scmp.ne.s32.totalorder %s110, %s111
    %p123 = scmp.eq.s32.totalorder %s17, 1
    %p124 = por %p122, %p123
    %p126 = scmp.ne.s32.totalorder %s111, %s125
    %p127 = scmp.eq.s32.totalorder %s17, 0
    %p128 = por %p126, %p127
    %s129 = ssub.s32 %s11, %s18
    %p130 = scmp.eq.s32.totalorder %s129, 0
    %s132 = sadd.s32 %s131, 1
    %s133 = scalar_select %p130, %s131, %s132
    %p136 = pneg %p130
    %p137 = scmp.eq.s32.totalorder %s11, 1
    %p138 = por %p136, %p137
    %p139 = scmp.ne.s32.totalorder %s131, %s134
    %p140 = scmp.eq.s32.totalorder %s11, 0
    %p141 = por %p139, %p140
    %p142 = scmp.ne.s32.totalorder %s131, %s134
    %p143 = scmp.eq.s32.totalorder %s16, 1
    %p144 = por %p142, %p143
    %p145 = scmp.ne.s32.totalorder %s134, %s135
    %p146 = scmp.eq.s32.totalorder %s16, 0
    %p147 = por %p145, %p146
    %p148 = scmp.ne.s32.totalorder %s134, %s135
    %p149 = scmp.eq.s32.totalorder %s17, 1
    %p150 = por %p148, %p149
    %p152 = scmp.ne.s32.totalorder %s135, %s151
    %p153 = scmp.eq.s32.totalorder %s17, 0
    %p154 = por %p152, %p153
    %p155 = scmp.le.s32.totalorder 1, %s11
    %p156 = scmp.lt.s32.totalorder %s11, 3
    %p157 = pnand %p155, %p156
    %p158 = pneg %p157
    // Predicated region
    $region9: #{basic_block_forward.1} parent=5 // pred_check
      _
    $region10: #{basic_block_forward.1} parent=5 // pred_check_branch
      %160 = sbr.rel (%p157) target = $region12
    $region11: #{basic_block_forward.1} parent=5 // pred_region
      %s161 = ssub.s32 %s11, 1
      // Predicated region
      $region13: #{basic_block_forward.1} parent=11 // pred_check
        %p162 = pneg %p58
      $region14: #{basic_block_forward.1} parent=11 // pred_check_branch
        %164 = sbr.rel (%p162) target = $region16
      $region15: #{basic_block_forward.1} parent=11 // pred_region
        _
      $region16: #{basic_block_forward.1} parent=11 // pred_fallthru
        _
      // Predicated region
      $region17: #{basic_block_forward.1} parent=11 // pred_check
        %p165 = pneg %p79
      $region18: #{basic_block_forward.1} parent=11 // pred_check_branch
        %167 = sbr.rel (%p165) target = $region20
      $region19: #{basic_block_forward.1} parent=11 // pred_region
        _
      $region20: #{basic_block_forward.1} parent=11 // pred_fallthru
        _
      // Predicated region
      $region21: #{basic_block_forward.1} parent=11 // pred_check
        %p168 = pneg %p100
      $region22: #{basic_block_forward.1} parent=11 // pred_check_branch
        %170 = sbr.rel (%p168) target = $region24
      $region23: #{basic_block_forward.1} parent=11 // pred_region
        _
      $region24: #{basic_block_forward.1} parent=11 // pred_fallthru
        _
      // Predicated region
      $region25: #{basic_block_forward.1} parent=11 // pred_check
        %p171 = pneg %p121
      $region26: #{basic_block_forward.1} parent=11 // pred_check_branch
        %173 = sbr.rel (%p171) target = $region28
      $region27: #{basic_block_forward.1} parent=11 // pred_region
        _
      $region28: #{basic_block_forward.1} parent=11 // pred_fallthru
        _
    $region12: #{basic_block_forward.1} parent=5 // pred_fallthru
      _
    %p174 = scmp.lt.s32.totalorder %s11, 2
    // Predicated region
    $region29: #{basic_block_forward.1} parent=5 // pred_check
      %p175 = pneg %p174
    $region30: #{basic_block_forward.1} parent=5 // pred_check_branch
      %177 = sbr.rel (%p175) target = $region32
    $region31: #{basic_block_forward.1} parent=5 // pred_region
      // Predicated region
      $region33: #{basic_block_forward.1} parent=31 // pred_check
        %p178 = pneg %p31
      $region34: #{basic_block_forward.1} parent=31 // pred_check_branch
        %180 = sbr.rel (%p178) target = $region36
      $region35: #{basic_block_forward.1} parent=31 // pred_region
        %s181 = smul.u32 2, %s11
        %p182 = scmp.lt.s32.totalorder %s181, 3
        %s183 = scalar_select %p182, %s181, 3
        %s184 = smul.addr %s183, 2
        %s185 = smul.addr %s184, 8
        %s186 = scalar_lea.vmem %s0, %s185
        %s187 = smul.u32 2, %s11
      $region36: #{basic_block_forward.1} parent=31 // pred_fallthru
        _
    $region32: #{basic_block_forward.1} parent=5 // pred_fallthru
      _
    %p188 = scmp.le.s32.totalorder 1, %s11
    %p189 = scmp.lt.s32.totalorder %s11, 3
    %p190 = pnand %p188, %p189
    %p191 = pneg %p190
    // Predicated region
    $region37: #{basic_block_forward.1} parent=5 // pred_check
      _
    $region38: #{basic_block_forward.1} parent=5 // pred_check_branch
      %193 = sbr.rel (%p190) target = $region40
    $region39: #{basic_block_forward.1} parent=5 // pred_region
      %s194 = ssub.s32 %s11, 1
      %s195 = smul.u32 2, %s16
      %p196 = scmp.lt.s32.totalorder %s195, 3
      %s197 = scalar_select %p196, %s195, 3
      %s198 = smul.addr %s197, 2
      %s199 = smul.addr %s198, 8
      %s200 = scalar_lea.vmem %s0, %s199
      %p201 = pneg %p37
      %p202 = pneg %p34
      %p203 = pneg %p58
      %p204 = pneg %p55
      %p205 = pneg %p79
      %p206 = pneg %p76
      %p207 = pneg %p100
      %p208 = pneg %p97
      %p209 = pneg %p121
      %p210 = pneg %p118
      %p211 = pneg %p147
      %p212 = pneg %p144
      %s213 = smul.u32 2, %s16
      %p214 = scmp.lt.s32.totalorder %s213, 3
      %s215 = scalar_select %p214, %s213, 3
      %s216 = smul.addr %s215, 2
      %s217 = smul.addr %s216, 8
      %s218 = scalar_lea.vmem %s5, %s217
      %s219 = smul.u32 2, %s16
      %p220 = scmp.lt.s32.totalorder %s219, 3
      %s221 = scalar_select %p220, %s219, 3
      %s222 = smul.addr %s221, 2
      %s223 = smul.addr %s222, 8
      %s224 = scalar_lea.vmem %s0, %s223
      %s225 = smul.u32 2, %s16
      %s226 = smul.u32 2, %s16
      %p227 = scmp.lt.s32.totalorder %s226, 3
      %s228 = scalar_select %p227, %s226, 3
      %s229 = smul.addr %s228, 2
      %s230 = smul.addr %s229, 8
      %s231 = scalar_lea.vmem %s5, %s230
      %s232 = smul.u32 2, %s16
      %234 = vst [vmem:[#allocation2] sm:$0x1] 0.0
      %235 = vst [vmem:[#allocation2 + $0x18] sm:$0x1] 0.0
      %236 = vst [vmem:[#allocation2 + $0x11] sm:$0x1] 0.0
      %237 = vst [vmem:[#allocation2 + $0x29] sm:$0x1] 0.0
      %v238 = vld [vmem:[%s224] sm:$0xff]
      %v239 = vld [vmem:[%s224 + $0x8] sm:$0xff]
      %v240 = vld [vmem:[%s224 + $0x10] sm:$0xff]
      %v241 = vld [vmem:[%s224 + $0x18] sm:$0xff]
      %242 = vst [vmem:[#allocation2 + $0x1] sm:$0xff] %v238
      %243 = vst [vmem:[#allocation2 + $0x9] sm:$0xff] %v239
      %244 = vst [vmem:[#allocation2 + $0x19] sm:$0xff] %v240
      %245 = vst [vmem:[#allocation2 + $0x21] sm:$0xff] %v241
      %v246 = vld [vmem:[#allocation2] sm:$0xff]
      %v247 = vld [vmem:[#allocation2 + $0x8] sm:$0xff]
      %v248 = vld [vmem:[#allocation2 + $0x18] sm:$0xff]
      %v249 = vld [vmem:[#allocation2 + $0x20] sm:$0xff]
      %v250 = vpack.c.bf16 %v247, %v246
      %v251 = vpack.c.bf16 %v249, %v248
      %v252 = vld [vmem:[#allocation2 + $0x1] sm:$0xff]
      %v253 = vld [vmem:[#allocation2 + $0x9] sm:$0xff]
      %v254 = vld [vmem:[#allocation2 + $0x19] sm:$0xff]
      %v255 = vld [vmem:[#allocation2 + $0x21] sm:$0xff]
      %v256 = vpack.c.bf16 %v253, %v252
      %v257 = vpack.c.bf16 %v255, %v254
      %v258 = vld [vmem:[#allocation2 + $0x2] sm:$0xff]
      %v259 = vld [vmem:[#allocation2 + $0xa] sm:$0xff]
      %v260 = vld [vmem:[#allocation2 + $0x1a] sm:$0xff]
      %v261 = vld [vmem:[#allocation2 + $0x22] sm:$0xff]
      %v262 = vpack.c.bf16 %v259, %v258
      %v263 = vpack.c.bf16 %v261, %v260
      %v264 = vld [vmem:[%s1] sm:$0xf]
      %v265 = vld [vmem:[%s1 + $0x4] sm:$0xf]
      %v266 = vld [vmem:[%s1 + $0x8] sm:$0xf]
      %v267 = vld [vmem:[%s1 + $0xc] sm:$0xf]
      %v268 = vld [vmem:[%s1 + $0x10] sm:$0xf]
      %v269 = vld [vmem:[%s1 + $0x14] sm:$0xf]
      %v270 = vld [vmem:[%s1 + $0x18] sm:$0xf]
      %v271 = vld [vmem:[%s1 + $0x1c] sm:$0xf]
      %v272 = vld [vmem:[%s1 + $0x20] sm:$0xf]
      %v273 = vld [vmem:[%s1 + $0x24] sm:$0xf]
      %v274 = vld [vmem:[%s1 + $0x28] sm:$0xf]
      %v275 = vld [vmem:[%s1 + $0x2c] sm:$0xf]
      %v276 = vld [vmem:[%s1 + $0x30] sm:$0xf]
      %v277 = vld [vmem:[%s1 + $0x34] sm:$0xf]
      %v278 = vld [vmem:[%s1 + $0x38] sm:$0xf]
      %v279 = vld [vmem:[%s1 + $0x3c] sm:$0xf]
      %v280 = vld [vmem:[%s1 + $0x40] sm:$0xf]
      %v281 = vld [vmem:[%s1 + $0x44] sm:$0xf]
      %v282 = vld [vmem:[%s1 + $0x48] sm:$0xf]
      %v283 = vld [vmem:[%s1 + $0x4c] sm:$0xf]
      %v284 = vld [vmem:[%s1 + $0x50] sm:$0xf]
      %v285 = vld [vmem:[%s1 + $0x54] sm:$0xf]
      %v286 = vld [vmem:[%s1 + $0x58] sm:$0xf]
      %v287 = vld [vmem:[%s1 + $0x5c] sm:$0xf]
      %v288 = vld [vmem:[%s1 + $0x60] sm:$0xf]
      %v289 = vld [vmem:[%s1 + $0x64] sm:$0xf]
      %v290 = vld [vmem:[%s1 + $0x68] sm:$0xf]
      %v291 = vld [vmem:[%s1 + $0x6c] sm:$0xf]
      %v292 = vld [vmem:[%s1 + $0x70] sm:$0xf]
      %v293 = vld [vmem:[%s1 + $0x74] sm:$0xf]
      %v294 = vld [vmem:[%s1 + $0x78] sm:$0xf]
      %v295 = vld [vmem:[%s1 + $0x7c] sm:$0xf]
      %v296 = vld [vmem:[%s1 + $0x80] sm:$0xf]
      %v297 = vld [vmem:[%s1 + $0x84] sm:$0xf]
      %v298 = vld [vmem:[%s1 + $0x88] sm:$0xf]
      %v299 = vld [vmem:[%s1 + $0x8c] sm:$0xf]
      %v300 = vld [vmem:[%s1 + $0x90] sm:$0xf]
      %v301 = vld [vmem:[%s1 + $0x94] sm:$0xf]
      %v302 = vld [vmem:[%s1 + $0x98] sm:$0xf]
      %v303 = vld [vmem:[%s1 + $0x9c] sm:$0xf]
      %v304 = vld [vmem:[%s1 + $0xa0] sm:$0xf]
      %v305 = vld [vmem:[%s1 + $0xa4] sm:$0xf]
      %v306 = vld [vmem:[%s1 + $0xa8] sm:$0xf]
      %v307 = vld [vmem:[%s1 + $0xac] sm:$0xf]
      %v308 = vld [vmem:[%s1 + $0xb0] sm:$0xf]
      %v309 = vld [vmem:[%s1 + $0xb4] sm:$0xf]
      %v310 = vld [vmem:[%s1 + $0xb8] sm:$0xf]
      %v311 = vld [vmem:[%s1 + $0xbc] sm:$0xf]
      %v360 = vunpack.c.l.b16 %v264
      %v361 = vunpack.c.l.b16 %v265
      %v362 = vunpack.c.l.b16 %v266
      %v363 = vunpack.c.l.b16 %v267
      %v364 = vunpack.c.l.b16 %v268
      %v365 = vunpack.c.l.b16 %v269
      %v366 = vunpack.c.l.b16 %v270
      %v367 = vunpack.c.l.b16 %v271
      %v368 = vunpack.c.l.b16 %v272
      %v369 = vunpack.c.l.b16 %v273
      %v370 = vunpack.c.l.b16 %v274
      %v371 = vunpack.c.l.b16 %v275
      %v372 = vunpack.c.l.b16 %v276
      %v373 = vunpack.c.l.b16 %v277
      %v374 = vunpack.c.l.b16 %v278
      %v375 = vunpack.c.l.b16 %v279
      %v376 = vunpack.c.l.b16 %v280
      %v377 = vunpack.c.l.b16 %v281
      %v378 = vunpack.c.l.b16 %v282
      %v379 = vunpack.c.l.b16 %v283
      %v380 = vunpack.c.l.b16 %v284
      %v381 = vunpack.c.l.b16 %v285
      %v382 = vunpack.c.l.b16 %v286
      %v383 = vunpack.c.l.b16 %v287
      %v384 = vunpack.c.l.b16 %v288
      %v385 = vunpack.c.l.b16 %v289
      %v386 = vunpack.c.l.b16 %v290
      %v387 = vunpack.c.l.b16 %v291
      %v388 = vunpack.c.l.b16 %v292
      %v389 = vunpack.c.l.b16 %v293
      %v390 = vunpack.c.l.b16 %v294
      %v391 = vunpack.c.l.b16 %v295
      %v392 = vunpack.c.l.b16 %v296
      %v393 = vunpack.c.l.b16 %v297
      %v394 = vunpack.c.l.b16 %v298
      %v395 = vunpack.c.l.b16 %v299
      %v396 = vunpack.c.l.b16 %v300
      %v397 = vunpack.c.l.b16 %v301
      %v398 = vunpack.c.l.b16 %v302
      %v399 = vunpack.c.l.b16 %v303
      %v400 = vunpack.c.l.b16 %v304
      %v401 = vunpack.c.l.b16 %v305
      %v402 = vunpack.c.l.b16 %v306
      %v403 = vunpack.c.l.b16 %v307
      %v404 = vunpack.c.l.b16 %v308
      %v405 = vunpack.c.l.b16 %v309
      %v406 = vunpack.c.l.b16 %v310
      %v407 = vunpack.c.l.b16 %v311
      %v408 = vpack.c.b16 %v361, %v360
      %v409 = vpack.c.b16 %v363, %v362
      %v410 = vpack.c.b16 %v365, %v364
      %v411 = vpack.c.b16 %v367, %v366
      %v412 = vpack.c.b16 %v369, %v368
      %v413 = vpack.c.b16 %v371, %v370
      %v414 = vpack.c.b16 %v373, %v372
      %v415 = vpack.c.b16 %v375, %v374
      %v416 = vpack.c.b16 %v377, %v376
      %v417 = vpack.c.b16 %v379, %v378
      %v418 = vpack.c.b16 %v381, %v380
      %v419 = vpack.c.b16 %v383, %v382
      %v420 = vpack.c.b16 %v385, %v384
      %v421 = vpack.c.b16 %v387, %v386
      %v422 = vpack.c.b16 %v389, %v388
      %v423 = vpack.c.b16 %v391, %v390
      %v424 = vpack.c.b16 %v393, %v392
      %v425 = vpack.c.b16 %v395, %v394
      %v426 = vpack.c.b16 %v397, %v396
      %v427 = vpack.c.b16 %v399, %v398
      %v428 = vpack.c.b16 %v401, %v400
      %v429 = vpack.c.b16 %v403, %v402
      %v430 = vpack.c.b16 %v405, %v404
      %v431 = vpack.c.b16 %v407, %v406
      %456 = vmatprep.subr.bf16.mxu0 0
      %457 = vmatpush1.bf16.msra.mxu0 %v415
      %458 = vmatprep.subr.bf16.mxu0 0
      %459 = vmatpush1.bf16.msra.mxu0 %v414
      %460 = vmatprep.subr.bf16.mxu0 0
      %461 = vmatpush1.bf16.msra.mxu0 %v413
      %462 = vmatprep.subr.bf16.mxu0 0
      %463 = vmatpush1.bf16.msra.mxu0 %v412
      %464 = vmatprep.subr.bf16.mxu0 0
      %465 = vmatpush1.bf16.msra.mxu0 %v411
      %466 = vmatprep.subr.bf16.mxu0 0
      %467 = vmatpush1.bf16.msra.mxu0 %v410
      %468 = vmatprep.subr.bf16.mxu0 0
      %469 = vmatpush1.bf16.msra.mxu0 %v409
      %470 = vmatprep.subr.bf16.mxu0 0
      %471 = vmatpush1.bf16.msra.mxu0 %v408
      %472 = vmatprep.subr.bf16.mxu0 0
      %473 = vmatpush2.bf16.msra.mxu0 %v423
      %474 = vmatprep.subr.bf16.mxu0 0
      %475 = vmatpush2.bf16.msra.mxu0 %v422
      %476 = vmatprep.subr.bf16.mxu0 0
      %477 = vmatpush2.bf16.msra.mxu0 %v421
      %478 = vmatprep.subr.bf16.mxu0 0
      %479 = vmatpush2.bf16.msra.mxu0 %v420
      %480 = vmatprep.subr.bf16.mxu0 0
      %481 = vmatpush2.bf16.msra.mxu0 %v419
      %482 = vmatprep.subr.bf16.mxu0 0
      %483 = vmatpush2.bf16.msra.mxu0 %v418
      %484 = vmatprep.subr.bf16.mxu0 0
      %485 = vmatpush2.bf16.msra.mxu0 %v417
      %486 = vmatprep.subr.bf16.mxu0 0
      %487 = vmatpush2.bf16.msra.mxu0 %v416
      %488 = vmatprep.mubr.bf16.mxu0 %v256
      %489 = vmatmul.mubr.bf16.gmra.mxu0 %v250
      %v490 = vpop.f32.mrf.mxu0
      %v491 = vadd.f32 0.0, %v490
      %v492 = vpop.f32.mrf.mxu0
      %v493 = vpop.f32.mrf.mxu0
      %v494 = vadd.f32 0.0, %v493
      %v495 = vpop.f32.mrf.mxu0
      %496 = vmatprep.mubr.bf16.mxu0 %v257
      %497 = vmatmul.mubr.bf16.gmra.mxu0 %v251
      %v498 = vpop.f32.mrf.mxu0
      %v499 = vadd.f32 0.0, %v498
      %v500 = vpop.f32.mrf.mxu0
      %v501 = vpop.f32.mrf.mxu0
      %v502 = vadd.f32 0.0, %v501
      %v503 = vpop.f32.mrf.mxu0
      %504 = vdwg.mxu0
      %505 = vmatprep.subr.bf16.mxu0 0
      %506 = vmatpush1.bf16.msra.mxu0 %v431
      %507 = vmatprep.subr.bf16.mxu0 0
      %508 = vmatpush1.bf16.msra.mxu0 %v430
      %509 = vmatprep.subr.bf16.mxu0 0
      %510 = vmatpush1.bf16.msra.mxu0 %v429
      %511 = vmatprep.subr.bf16.mxu0 0
      %512 = vmatpush1.bf16.msra.mxu0 %v428
      %513 = vmatprep.subr.bf16.mxu0 0
      %514 = vmatpush1.bf16.msra.mxu0 %v427
      %515 = vmatprep.subr.bf16.mxu0 0
      %516 = vmatpush1.bf16.msra.mxu0 %v426
      %517 = vmatprep.subr.bf16.mxu0 0
      %518 = vmatpush1.bf16.msra.mxu0 %v425
      %519 = vmatprep.subr.bf16.mxu0 0
      %520 = vmatpush1.bf16.msra.mxu0 %v424
      %521 = vmatprep.subr.bf16.mxu0 0
      %522 = vmatpush2.bf16.msra.mxu0 0
      %523 = vmatprep.subr.bf16.mxu0 0
      %524 = vmatpush2.bf16.msra.mxu0 0
      %525 = vmatprep.subr.bf16.mxu0 0
      %526 = vmatpush2.bf16.msra.mxu0 0
      %527 = vmatprep.subr.bf16.mxu0 0
      %528 = vmatpush2.bf16.msra.mxu0 0
      %529 = vmatprep.subr.bf16.mxu0 0
      %530 = vmatpush2.bf16.msra.mxu0 0
      %531 = vmatprep.subr.bf16.mxu0 0
      %532 = vmatpush2.bf16.msra.mxu0 0
      %533 = vmatprep.subr.bf16.mxu0 0
      %534 = vmatpush2.bf16.msra.mxu0 0
      %535 = vmatprep.subr.bf16.mxu0 0
      %536 = vmatpush2.bf16.msra.mxu0 0
      %537 = vmatprep.mubr.bf16.mxu0 0
      %538 = vmatmul.mubr.bf16.gmra.mxu0 %v262
      %v539 = vpop.f32.mrf.mxu0
      %v540 = vadd.f32 %v491, %v539
      %v541 = vpop.f32.mrf.mxu0
      %v542 = vpop.f32.mrf.mxu0
      %v543 = vadd.f32 %v494, %v542
      %v544 = vpop.f32.mrf.mxu0
      %545 = vmatprep.mubr.bf16.mxu0 0
      %546 = vmatmul.mubr.bf16.gmra.mxu0 %v263
      %v547 = vpop.f32.mrf.mxu0
      %v548 = vadd.f32 %v499, %v547
      %v549 = vpop.f32.mrf.mxu0
      %v550 = vpop.f32.mrf.mxu0
      %v551 = vadd.f32 %v502, %v550
      %v552 = vpop.f32.mrf.mxu0
      %553 = vdwg.mxu0
      %v554 = vld [vmem:[%s2] sm:$0x1]
      %v556 = vlaneseq
      %v557 = vshrl.u32 %v556, 7
      %v558 = vsub.s32 0, %v557
      %v559 = vrot.slane %v554, %v558
      %v561 = vadd.f32 %v540, %v559
      %v562 = vadd.f32 %v543, %v559
      %v563 = vadd.f32 %v548, %v559
      %v564 = vadd.f32 %v551, %v559
      %v565 = vmul.f32 %v561, 0.2
      %v566 = vmul.f32 %v562, 0.2
      %v567 = vmul.f32 %v563, 0.2
      %v568 = vmul.f32 %v564, 0.2
      %v569 = vmax.f32 %v561, %v565
      %v570 = vmax.f32 %v562, %v566
      %v571 = vmax.f32 %v563, %v567
      %v572 = vmax.f32 %v564, %v568
      %573 = vst [vmem:[#allocation2 + $0x1] sm:$0xff] %v569
      %574 = vst [vmem:[#allocation2 + $0x9] sm:$0xff] %v570
      %575 = vst [vmem:[#allocation2 + $0x19] sm:$0xff] %v571
      %576 = vst [vmem:[#allocation2 + $0x21] sm:$0xff] %v572
      %v577 = vld [vmem:[#allocation2] sm:$0xff]
      %v578 = vld [vmem:[#allocation2 + $0x8] sm:$0xff]
      %v579 = vld [vmem:[#allocation2 + $0x18] sm:$0xff]
      %v580 = vld [vmem:[#allocation2 + $0x20] sm:$0xff]
      %v581 = vpack.c.bf16 %v578, %v577
      %v582 = vpack.c.bf16 %v580, %v579
      %v583 = vld [vmem:[#allocation2 + $0x1] sm:$0xff]
      %v584 = vld [vmem:[#allocation2 + $0x9] sm:$0xff]
      %v585 = vld [vmem:[#allocation2 + $0x19] sm:$0xff]
      %v586 = vld [vmem:[#allocation2 + $0x21] sm:$0xff]
      %v587 = vpack.c.bf16 %v584, %v583
      %v588 = vpack.c.bf16 %v586, %v585
      %v589 = vld [vmem:[#allocation2 + $0x2] sm:$0xff]
      %v590 = vld [vmem:[#allocation2 + $0xa] sm:$0xff]
      %v591 = vld [vmem:[#allocation2 + $0x1a] sm:$0xff]
      %v592 = vld [vmem:[#allocation2 + $0x22] sm:$0xff]
      %v593 = vpack.c.bf16 %v590, %v589
      %v594 = vpack.c.bf16 %v592, %v591
      %v595 = vld [vmem:[%s3] sm:$0xf]
      %v596 = vld [vmem:[%s3 + $0x4] sm:$0xf]
      %v597 = vld [vmem:[%s3 + $0x8] sm:$0xf]
      %v598 = vld [vmem:[%s3 + $0xc] sm:$0xf]
      %v599 = vld [vmem:[%s3 + $0x10] sm:$0xf]
      %v600 = vld [vmem:[%s3 + $0x14] sm:$0xf]
      %v601 = vld [vmem:[%s3 + $0x18] sm:$0xf]
      %v602 = vld [vmem:[%s3 + $0x1c] sm:$0xf]
      %v603 = vld [vmem:[%s3 + $0x20] sm:$0xf]
      %v604 = vld [vmem:[%s3 + $0x24] sm:$0xf]
      %v605 = vld [vmem:[%s3 + $0x28] sm:$0xf]
      %v606 = vld [vmem:[%s3 + $0x2c] sm:$0xf]
      %v607 = vld [vmem:[%s3 + $0x30] sm:$0xf]
      %v608 = vld [vmem:[%s3 + $0x34] sm:$0xf]
      %v609 = vld [vmem:[%s3 + $0x38] sm:$0xf]
      %v610 = vld [vmem:[%s3 + $0x3c] sm:$0xf]
      %v611 = vld [vmem:[%s3 + $0x40] sm:$0xf]
      %v612 = vld [vmem:[%s3 + $0x44] sm:$0xf]
      %v613 = vld [vmem:[%s3 + $0x48] sm:$0xf]
      %v614 = vld [vmem:[%s3 + $0x4c] sm:$0xf]
      %v615 = vld [vmem:[%s3 + $0x50] sm:$0xf]
      %v616 = vld [vmem:[%s3 + $0x54] sm:$0xf]
      %v617 = vld [vmem:[%s3 + $0x58] sm:$0xf]
      %v618 = vld [vmem:[%s3 + $0x5c] sm:$0xf]
      %v619 = vld [vmem:[%s3 + $0x60] sm:$0xf]
      %v620 = vld [vmem:[%s3 + $0x64] sm:$0xf]
      %v621 = vld [vmem:[%s3 + $0x68] sm:$0xf]
      %v622 = vld [vmem:[%s3 + $0x6c] sm:$0xf]
      %v623 = vld [vmem:[%s3 + $0x70] sm:$0xf]
      %v624 = vld [vmem:[%s3 + $0x74] sm:$0xf]
      %v625 = vld [vmem:[%s3 + $0x78] sm:$0xf]
      %v626 = vld [vmem:[%s3 + $0x7c] sm:$0xf]
      %v627 = vld [vmem:[%s3 + $0x80] sm:$0xf]
      %v628 = vld [vmem:[%s3 + $0x84] sm:$0xf]
      %v629 = vld [vmem:[%s3 + $0x88] sm:$0xf]
      %v630 = vld [vmem:[%s3 + $0x8c] sm:$0xf]
      %v631 = vld [vmem:[%s3 + $0x90] sm:$0xf]
      %v632 = vld [vmem:[%s3 + $0x94] sm:$0xf]
      %v633 = vld [vmem:[%s3 + $0x98] sm:$0xf]
      %v634 = vld [vmem:[%s3 + $0x9c] sm:$0xf]
      %v635 = vld [vmem:[%s3 + $0xa0] sm:$0xf]
      %v636 = vld [vmem:[%s3 + $0xa4] sm:$0xf]
      %v637 = vld [vmem:[%s3 + $0xa8] sm:$0xf]
      %v638 = vld [vmem:[%s3 + $0xac] sm:$0xf]
      %v639 = vld [vmem:[%s3 + $0xb0] sm:$0xf]
      %v640 = vld [vmem:[%s3 + $0xb4] sm:$0xf]
      %v641 = vld [vmem:[%s3 + $0xb8] sm:$0xf]
      %v642 = vld [vmem:[%s3 + $0xbc] sm:$0xf]
      %v691 = vunpack.c.l.b16 %v595
      %v692 = vunpack.c.l.b16 %v596
      %v693 = vunpack.c.l.b16 %v597
      %v694 = vunpack.c.l.b16 %v598
      %v695 = vunpack.c.l.b16 %v599
      %v696 = vunpack.c.l.b16 %v600
      %v697 = vunpack.c.l.b16 %v601
      %v698 = vunpack.c.l.b16 %v602
      %v699 = vunpack.c.l.b16 %v603
      %v700 = vunpack.c.l.b16 %v604
      %v701 = vunpack.c.l.b16 %v605
      %v702 = vunpack.c.l.b16 %v606
      %v703 = vunpack.c.l.b16 %v607
      %v704 = vunpack.c.l.b16 %v608
      %v705 = vunpack.c.l.b16 %v609
      %v706 = vunpack.c.l.b16 %v610
      %v707 = vunpack.c.l.b16 %v611
      %v708 = vunpack.c.l.b16 %v612
      %v709 = vunpack.c.l.b16 %v613
      %v710 = vunpack.c.l.b16 %v614
      %v711 = vunpack.c.l.b16 %v615
      %v712 = vunpack.c.l.b16 %v616
      %v713 = vunpack.c.l.b16 %v617
      %v714 = vunpack.c.l.b16 %v618
      %v715 = vunpack.c.l.b16 %v619
      %v716 = vunpack.c.l.b16 %v620
      %v717 = vunpack.c.l.b16 %v621
      %v718 = vunpack.c.l.b16 %v622
      %v719 = vunpack.c.l.b16 %v623
      %v720 = vunpack.c.l.b16 %v624
      %v721 = vunpack.c.l.b16 %v625
      %v722 = vunpack.c.l.b16 %v626
      %v723 = vunpack.c.l.b16 %v627
      %v724 = vunpack.c.l.b16 %v628
      %v725 = vunpack.c.l.b16 %v629
      %v726 = vunpack.c.l.b16 %v630
      %v727 = vunpack.c.l.b16 %v631
      %v728 = vunpack.c.l.b16 %v632
      %v729 = vunpack.c.l.b16 %v633
      %v730 = vunpack.c.l.b16 %v634
      %v731 = vunpack.c.l.b16 %v635
      %v732 = vunpack.c.l.b16 %v636
      %v733 = vunpack.c.l.b16 %v637
      %v734 = vunpack.c.l.b16 %v638
      %v735 = vunpack.c.l.b16 %v639
      %v736 = vunpack.c.l.b16 %v640
      %v737 = vunpack.c.l.b16 %v641
      %v738 = vunpack.c.l.b16 %v642
      %v739 = vpack.c.b16 %v692, %v691
      %v740 = vpack.c.b16 %v694, %v693
      %v741 = vpack.c.b16 %v696, %v695
      %v742 = vpack.c.b16 %v698, %v697
      %v743 = vpack.c.b16 %v700, %v699
      %v744 = vpack.c.b16 %v702, %v701
      %v745 = vpack.c.b16 %v704, %v703
      %v746 = vpack.c.b16 %v706, %v705
      %v747 = vpack.c.b16 %v708, %v707
      %v748 = vpack.c.b16 %v710, %v709
      %v749 = vpack.c.b16 %v712, %v711
      %v750 = vpack.c.b16 %v714, %v713
      %v751 = vpack.c.b16 %v716, %v715
      %v752 = vpack.c.b16 %v718, %v717
      %v753 = vpack.c.b16 %v720, %v719
      %v754 = vpack.c.b16 %v722, %v721
      %v755 = vpack.c.b16 %v724, %v723
      %v756 = vpack.c.b16 %v726, %v725
      %v757 = vpack.c.b16 %v728, %v727
      %v758 = vpack.c.b16 %v730, %v729
      %v759 = vpack.c.b16 %v732, %v731
      %v760 = vpack.c.b16 %v734, %v733
      %v761 = vpack.c.b16 %v736, %v735
      %v762 = vpack.c.b16 %v738, %v737
      %787 = vmatprep.subr.bf16.mxu0 0
      %788 = vmatpush1.bf16.msra.mxu0 %v746
      %789 = vmatprep.subr.bf16.mxu0 0
      %790 = vmatpush1.bf16.msra.mxu0 %v745
      %791 = vmatprep.subr.bf16.mxu0 0
      %792 = vmatpush1.bf16.msra.mxu0 %v744
      %793 = vmatprep.subr.bf16.mxu0 0
      %794 = vmatpush1.bf16.msra.mxu0 %v743
      %795 = vmatprep.subr.bf16.mxu0 0
      %796 = vmatpush1.bf16.msra.mxu0 %v742
      %797 = vmatprep.subr.bf16.mxu0 0
      %798 = vmatpush1.bf16.msra.mxu0 %v741
      %799 = vmatprep.subr.bf16.mxu0 0
      %800 = vmatpush1.bf16.msra.mxu0 %v740
      %801 = vmatprep.subr.bf16.mxu0 0
      %802 = vmatpush1.bf16.msra.mxu0 %v739
      %803 = vmatprep.subr.bf16.mxu0 0
      %804 = vmatpush2.bf16.msra.mxu0 %v754
      %805 = vmatprep.subr.bf16.mxu0 0
      %806 = vmatpush2.bf16.msra.mxu0 %v753
      %807 = vmatprep.subr.bf16.mxu0 0
      %808 = vmatpush2.bf16.msra.mxu0 %v752
      %809 = vmatprep.subr.bf16.mxu0 0
      %810 = vmatpush2.bf16.msra.mxu0 %v751
      %811 = vmatprep.subr.bf16.mxu0 0
      %812 = vmatpush2.bf16.msra.mxu0 %v750
      %813 = vmatprep.subr.bf16.mxu0 0
      %814 = vmatpush2.bf16.msra.mxu0 %v749
      %815 = vmatprep.subr.bf16.mxu0 0
      %816 = vmatpush2.bf16.msra.mxu0 %v748
      %817 = vmatprep.subr.bf16.mxu0 0
      %818 = vmatpush2.bf16.msra.mxu0 %v747
      %819 = vmatprep.mubr.bf16.mxu0 %v587
      %820 = vmatmul.mubr.bf16.gmra.mxu0 %v581
      %v821 = vpop.f32.mrf.mxu0
      %v822 = vadd.f32 0.0, %v821
      %v823 = vpop.f32.mrf.mxu0
      %v824 = vpop.f32.mrf.mxu0
      %v825 = vadd.f32 0.0, %v824
      %v826 = vpop.f32.mrf.mxu0
      %827 = vmatprep.mubr.bf16.mxu0 %v588
      %828 = vmatmul.mubr.bf16.gmra.mxu0 %v582
      %v829 = vpop.f32.mrf.mxu0
      %v830 = vadd.f32 0.0, %v829
      %v831 = vpop.f32.mrf.mxu0
      %v832 = vpop.f32.mrf.mxu0
      %v833 = vadd.f32 0.0, %v832
      %v834 = vpop.f32.mrf.mxu0
      %835 = vdwg.mxu0
      %836 = vmatprep.subr.bf16.mxu0 0
      %837 = vmatpush1.bf16.msra.mxu0 %v762
      %838 = vmatprep.subr.bf16.mxu0 0
      %839 = vmatpush1.bf16.msra.mxu0 %v761
      %840 = vmatprep.subr.bf16.mxu0 0
      %841 = vmatpush1.bf16.msra.mxu0 %v760
      %842 = vmatprep.subr.bf16.mxu0 0
      %843 = vmatpush1.bf16.msra.mxu0 %v759
      %844 = vmatprep.subr.bf16.mxu0 0
      %845 = vmatpush1.bf16.msra.mxu0 %v758
      %846 = vmatprep.subr.bf16.mxu0 0
      %847 = vmatpush1.bf16.msra.mxu0 %v757
      %848 = vmatprep.subr.bf16.mxu0 0
      %849 = vmatpush1.bf16.msra.mxu0 %v756
      %850 = vmatprep.subr.bf16.mxu0 0
      %851 = vmatpush1.bf16.msra.mxu0 %v755
      %852 = vmatprep.subr.bf16.mxu0 0
      %853 = vmatpush2.bf16.msra.mxu0 0
      %854 = vmatprep.subr.bf16.mxu0 0
      %855 = vmatpush2.bf16.msra.mxu0 0
      %856 = vmatprep.subr.bf16.mxu0 0
      %857 = vmatpush2.bf16.msra.mxu0 0
      %858 = vmatprep.subr.bf16.mxu0 0
      %859 = vmatpush2.bf16.msra.mxu0 0
      %860 = vmatprep.subr.bf16.mxu0 0
      %861 = vmatpush2.bf16.msra.mxu0 0
      %862 = vmatprep.subr.bf16.mxu0 0
      %863 = vmatpush2.bf16.msra.mxu0 0
      %864 = vmatprep.subr.bf16.mxu0 0
      %865 = vmatpush2.bf16.msra.mxu0 0
      %866 = vmatprep.subr.bf16.mxu0 0
      %867 = vmatpush2.bf16.msra.mxu0 0
      %868 = vmatprep.mubr.bf16.mxu0 0
      %869 = vmatmul.mubr.bf16.gmra.mxu0 %v593
      %v870 = vpop.f32.mrf.mxu0
      %v871 = vadd.f32 %v822, %v870
      %v872 = vpop.f32.mrf.mxu0
      %v873 = vpop.f32.mrf.mxu0
      %v874 = vadd.f32 %v825, %v873
      %v875 = vpop.f32.mrf.mxu0
      %876 = vmatprep.mubr.bf16.mxu0 0
      %877 = vmatmul.mubr.bf16.gmra.mxu0 %v594
      %v878 = vpop.f32.mrf.mxu0
      %v879 = vadd.f32 %v830, %v878
      %v880 = vpop.f32.mrf.mxu0
      %v881 = vpop.f32.mrf.mxu0
      %v882 = vadd.f32 %v833, %v881
      %v883 = vpop.f32.mrf.mxu0
      %884 = vdwg.mxu0
      %v885 = vld [vmem:[%s4] sm:$0x1]
      %v887 = vlaneseq
      %v888 = vshrl.u32 %v887, 7
      %v889 = vsub.s32 0, %v888
      %v890 = vrot.slane %v885, %v889
      %v892 = vadd.f32 %v871, %v890
      %v893 = vadd.f32 %v874, %v890
      %v894 = vadd.f32 %v879, %v890
      %v895 = vadd.f32 %v882, %v890
      %v896 = vadd.f32 %v892, %v238
      %v897 = vadd.f32 %v893, %v239
      %v898 = vadd.f32 %v894, %v240
      %v899 = vadd.f32 %v895, %v241
      %v900 = vmul.f32 %v896, 0.2
      %v901 = vmul.f32 %v897, 0.2
      %v902 = vmul.f32 %v898, 0.2
      %v903 = vmul.f32 %v899, 0.2
      %v904 = vmax.f32 %v896, %v900
      %v905 = vmax.f32 %v897, %v901
      %v906 = vmax.f32 %v898, %v902
      %v907 = vmax.f32 %v899, %v903
      %908 = vst [vmem:[%s231] sm:$0xff] %v904
      %909 = vst [vmem:[%s231 + $0x8] sm:$0xff] %v905
      %910 = vst [vmem:[%s231 + $0x10] sm:$0xff] %v906
      %911 = vst [vmem:[%s231 + $0x18] sm:$0xff] %v907
      %s912 = smul.u32 2, %s16
      %p913 = scmp.lt.s32.totalorder %s912, 3
      %s914 = scalar_select %p913, %s912, 3
      %s915 = smul.addr %s914, 2
      %s916 = smul.addr %s915, 8
      %s917 = scalar_lea.vmem %s5, %s916
      // Predicated region
      $region41: #{basic_block_forward.1} parent=39 // pred_check
        %p918 = pneg %p144
      $region42: #{basic_block_forward.1} parent=39 // pred_check_branch
        %920 = sbr.rel (%p918) target = $region44
      $region43: #{basic_block_forward.1} parent=39 // pred_region
        %s921 = smul.u32 2, %s16
      $region44: #{basic_block_forward.1} parent=39 // pred_fallthru
        _
    $region40: #{basic_block_forward.1} parent=5 // pred_fallthru
      _
    %p922 = scmp.le.s32.totalorder 2, %s11
    // Predicated region
    $region45: #{basic_block_forward.1} parent=5 // pred_check
      %p923 = pneg %p922
    $region46: #{basic_block_forward.1} parent=5 // pred_check_branch
      %925 = sbr.rel (%p923) target = $region48
    $region47: #{basic_block_forward.1} parent=5 // pred_region
      %s926 = ssub.s32 %s11, 2
      // Predicated region
      $region49: #{basic_block_forward.1} parent=47 // pred_check
        %p927 = pneg %p150
      $region50: #{basic_block_forward.1} parent=47 // pred_check_branch
        %929 = sbr.rel (%p927) target = $region52
      $region51: #{basic_block_forward.1} parent=47 // pred_region
        %s930 = smul.u32 2, %s17
        %p931 = scmp.lt.s32.totalorder %s930, 3
        %s932 = scalar_select %p931, %s930, 3
        %s933 = smul.addr %s932, 2
        %s934 = smul.addr %s933, 8
        %s935 = scalar_lea.vmem %s5, %s934
      $region52: #{basic_block_forward.1} parent=47 // pred_fallthru
        _
    $region48: #{basic_block_forward.1} parent=5 // pred_fallthru
      _
  $region6: #{basic_block_forward.1} parent=0 // loop_footer
    %s15 = sadd.s32 1, %s11
  $region7: #{basic_block_forward.1} parent=0 // loop_footer_branch
    %10 = sbr.rel target = $region3
  $region8: #{basic_block_forward.1} parent=0 // loop_exit
    _

</llo_original>
